<compile_context>
chip_gen: v5e
topology: v5e:2x2
jax: 0.10.0
libtpu: 0.0.40
codegen_flags: <defaults>
</compile_context>

<pallas_src>
import jax
import jax.numpy as jnp
from jax import lax
from jax.experimental import pallas as pl
from jax.experimental.pallas import tpu as pltpu

# ------------------------- sizes (small, synthetic) -------------------------
B = 2                   # batch
B_PAD = 8               # batch padded to a full sublane group
C_IN = 4                # image channels (stand-in)
C_PAD = 8               # channel dim padded for the conv contraction
IMG_HW = 16             # spatial side
HW = IMG_HW * IMG_HW    # pixels per image
BHW = B * HW            # all pixels
C_FEAT = 128            # backbone output channels (stand-in for resnet.fc.in_features)
EMBED = 32              # embed_size (GloVe dim stand-in)
HIDDEN = 32             # lstm hidden_dim
GATES = 4 * HIDDEN      # 128
VOCAB = 64              # vocab size
LANES = 128             # lane-dense width used everywhere
SEQ = 8                 # caption length
EPS = 1e-5              # BatchNorm1d eps

# ---------------------- packed weight-slab row offsets -----------------------
R_CONV = 0                      # (C_PAD, C_FEAT)  1x1-conv weight (rows >= C_IN zero)
R_BIAS = R_CONV + C_PAD         # (8, LANES)       row0=bconv, row1=b0, row2=bout
R_LIN = R_BIAS + 8              # (C_FEAT, LANES)  cnn_linear W^T in cols 0:EMBED
R_IH = R_LIN + C_FEAT           # (LANES, GATES)   gamma-scaled W_ih^T in rows 0:EMBED
R_EMB = R_IH + LANES            # (VOCAB, GATES)   emb_table @ W_ih^T + b (bias folded)
R_HH = R_EMB + VOCAB            # (LANES, GATES)   W_hh^T in rows 0:HIDDEN
R_OUT = R_HH + LANES            # (LANES, LANES)   W_out^T in rows 0:HIDDEN, cols 0:VOCAB
WSLAB_ROWS = R_OUT + LANES      # 592


# -------------------- pltpu.roll direction probe (runs once) -----------------
def _detect_roll_to_lane0():
    """Return fn(v, blk) that brings lanes [32*blk, 32*blk+32) of v down to lanes [0, 32)."""
    try:
        def probe(x_ref, o_ref):
            o_ref[...] = pltpu.roll(x_ref[...], 32, axis=1)

        x = lax.broadcasted_iota(jnp.float32, (8, LANES), 1)
        y = pl.pallas_call(
            probe,
            out_shape=jax.ShapeDtypeStruct((8, LANES), jnp.float32),
            in_specs=[pl.BlockSpec(memory_space=pltpu.MemorySpace.VMEM)],
            out_specs=pl.BlockSpec(memory_space=pltpu.MemorySpace.VMEM),
        )(x)
        first = int(jax.device_get(y)[0, 0])
    except Exception:
        first = -1
    if first == 32:    # pltpu.roll(x, s)[..., i] == x[..., (i + s) % n]
        return lambda v, blk: pltpu.roll(v, (HIDDEN * blk) % LANES, axis=1)
    if first == 96:    # pltpu.roll(x, s)[..., i] == x[..., (i - s) % n]  (jnp.roll convention)
        return lambda v, blk: pltpu.roll(v, (-HIDDEN * blk) % LANES, axis=1)
    # TODO(synk): pltpu.roll probe inconclusive on this backend -- fall back to jnp.roll.
    return lambda v, blk: jnp.roll(v, -HIDDEN * blk, axis=1)


_ROLL_TO_LANE0 = _detect_roll_to_lane0()


# ------------------------------ fused kernel ---------------------------------
def _fused_kernel(img_ref, cap_ref, w_ref, out_ref):
    f32 = jnp.float32

    # ---- backbone stand-in: 1x1 conv + ReLU as one (BHW, C_PAD) x (C_PAD, C_FEAT) dot ----
    bias_blk = w_ref[R_BIAS:R_BIAS + 8, :]                               # (8, 128)
    feat = jnp.maximum(
        jnp.dot(img_ref[...], w_ref[R_CONV:R_CONV + C_PAD, :],
                preferred_element_type=f32) + bias_blk[0:1, :], 0.0)     # (BHW, C_FEAT)

    # ---- AdaptiveAvgPool2d((1,1)) as one MXU dot against a block-diagonal 1/HW matrix ----
    row = lax.broadcasted_iota(jnp.int32, (B_PAD, BHW), 0)
    col = lax.broadcasted_iota(jnp.int32, (B_PAD, BHW), 1)
    pool = jnp.where((col >= row * HW) & (col < row * HW + HW), 1.0 / HW, 0.0)
    pooled = jnp.dot(pool, feat, preferred_element_type=f32)             # (B_PAD, C_FEAT)

    # ---- cnn_linear + BatchNorm1d (training-mode stats over the B real rows) ----
    # cnn_linear bias omitted: exactly cancelled by the batch-mean subtraction.
    lin = jnp.dot(pooled, w_ref[R_LIN:R_LIN + C_FEAT, :],
                  preferred_element_type=f32)                            # (B_PAD, 128)
    lin_b = lin[:B, :]
    mean = jnp.mean(lin_b, axis=0, keepdims=True)
    var = jnp.mean((lin_b - mean) ** 2, axis=0, keepdims=True)
    norm = (lin - mean) * lax.rsqrt(var + EPS)       # gamma/beta folded into R_IH / b0 row

    # ---- hoisted (non-recurrent) LSTM input transforms ----
    # t = 0 (image features):  gates0 = norm @ (gamma*W_ih) + (beta @ W_ih + b)
    gates0 = (jnp.dot(norm, w_ref[R_IH:R_IH + LANES, :], preferred_element_type=f32)
              + bias_blk[1:2, :])                                        # (B_PAD, GATES)
    # t = 1..SEQ: all caption one-hots in ONE compare + ONE dot against the
    # pre-folded (emb_table @ W_ih + b) table -> per-step input gates, bias included.
    ids = cap_ref[...]                                                   # (SEQ*B_PAD, 1), pad = -1
    vocab_iota = lax.broadcasted_iota(jnp.int32, (SEQ * B_PAD, VOCAB), 1)
    onehot = (vocab_iota == ids).astype(f32)                             # (SEQ*B_PAD, VOCAB)
    gates_x = jnp.dot(onehot, w_ref[R_EMB:R_EMB + VOCAB, :],
                      preferred_element_type=f32)                        # (SEQ*B_PAD, GATES)

    whh = w_ref[R_HH:R_HH + LANES, :]                                    # rows >= HIDDEN are zero

    # ---- recurrence: only h @ W_hh (+ one add) remains per step ----
    # Gate columns are (i, f, o, g). sigmoid/tanh run over the full 128-lane vreg;
    # three independent XLU rolls align f/o/g with the state's lanes [0, HIDDEN).
    # Lanes >= HIDDEN and rows >= B carry bounded garbage that the zero rows of
    # W_hh / W_out ignore exactly.
    def lstm_step(gates, c):
        sig = jax.nn.sigmoid(gates)
        tng = jnp.tanh(gates)
        f_al = _ROLL_TO_LANE0(sig, 1)
        o_al = _ROLL_TO_LANE0(sig, 2)
        g_al = _ROLL_TO_LANE0(tng, 3)
        c_new = f_al * c + sig * g_al
        h_new = o_al * jnp.tanh(c_new)
        return h_new, c_new

    h, c = lstm_step(gates0, jnp.zeros((B_PAD, GATES), f32))
    for t in range(SEQ):          # static unroll: live state is h, c and one gates_x slice
        gates = gates_x[t * B_PAD:(t + 1) * B_PAD, :] + jnp.dot(
            h, whh, preferred_element_type=f32)
        h, c = lstm_step(gates, c)

    # ---- final Linear(hidden -> vocab), lane-dense 128-wide store ----
    out_ref[...] = (jnp.dot(h, w_ref[R_OUT:R_OUT + LANES, :],
                            preferred_element_type=f32) + bias_blk[2:3, :])


def _fused_forward(img_pad, cap_ids, wslab):
    vspec = pl.BlockSpec(memory_space=pltpu.MemorySpace.VMEM)
    return pl.pallas_call(
        _fused_kernel,
        out_shape=jax.ShapeDtypeStruct((B_PAD, LANES), jnp.float32),
        in_specs=[vspec, vspec, vspec],
        out_specs=vspec,
    )(img_pad, cap_ids, wslab)


# ------------------------------ full forward ---------------------------------
@jax.jit
def image_captioning_lstm_forward(images_nchw, captions, wslab):
    bsz, c, h, w = images_nchw.shape
    # NCHW -> (pixels, channels); channels zero-padded 4 -> 8.
    # TODO(synk): lane-sparse (512, 8) image tile accepted per review (trivial size);
    #             a fully transposed (C, BHW) feed would need an in-kernel transpose later.
    img = jnp.transpose(images_nchw, (0, 2, 3, 1)).reshape(bsz * h * w, c)
    img_pad = jnp.pad(img, ((0, 0), (0, C_PAD - c)))
    # captions -> time-major (SEQ * B_PAD, 1) ids; pad rows = -1 (never matches a vocab id)
    cap_t = jnp.full((SEQ, B_PAD), -1, jnp.int32).at[:, :bsz].set(
        captions.astype(jnp.int32).T)
    cap_ids = cap_t.reshape(SEQ * B_PAD, 1)
    out_pad = _fused_forward(img_pad, cap_ids, wslab)
    return out_pad[:bsz, :VOCAB]


# --------------------------- parameter packing --------------------------------
def pack_params(p):
    """Fold + pack all weights into one (WSLAB_ROWS, 128) slab (single DMA)."""
    z = lambda r, cols=LANES: jnp.zeros((r, cols), jnp.float32)
    wconv_pad = z(C_PAD, C_FEAT).at[:C_IN].set(p["wconv"])
    # BatchNorm affine folded into the t=0 input projection:
    #   (norm*gamma + beta) @ W_ih + b  ==  norm @ (gamma.T * W_ih) + (beta @ W_ih + b)
    b0 = p["beta"] @ p["wih_t"] + p["b"]
    bias_rows = z(8)
    bias_rows = bias_rows.at[0].set(p["bconv"][0])
    bias_rows = bias_rows.at[1].set(b0[0])
    bias_rows = bias_rows.at[2, :VOCAB].set(p["bout"][0])
    wlin_pad = z(C_FEAT).at[:, :EMBED].set(p["wlin_t"])
    wih_g_pad = z(LANES).at[:EMBED].set(p["gamma"].T * p["wih_t"])
    emb_wih_b = p["emb_table"] @ p["wih_t"] + p["b"]            # (VOCAB, GATES), bias folded
    whh_pad = z(LANES).at[:HIDDEN].set(p["whh_t"])
    wout_pad = z(LANES).at[:HIDDEN, :VOCAB].set(p["wout"])
    wslab = jnp.concatenate([wconv_pad, bias_rows, wlin_pad, wih_g_pad,
                             emb_wih_b, whh_pad, wout_pad], axis=0)
    assert wslab.shape == (WSLAB_ROWS, LANES)
    return wslab


def make_params(key):
    ks = jax.random.split(key, 12)
    n = lambda k, shape, s=0.1: jax.random.normal(k, shape, jnp.float32) * s
    return {
        # frozen backbone stand-in (1x1 conv)
        "wconv": n(ks[0], (C_IN, C_FEAT)),
        "bconv": n(ks[1], (1, C_FEAT)),
        # cnn_linear (stored transposed: x @ W^T == x @ wlin_t)
        "wlin_t": n(ks[2], (C_FEAT, EMBED)),
        "blin": n(ks[3], (1, EMBED)),
        # BatchNorm1d affine
        "gamma": 1.0 + n(ks[4], (1, EMBED)),
        "beta": n(ks[5], (1, EMBED)),
        # frozen embedding table (GloVe stand-in)
        "emb_table": n(ks[6], (VOCAB, EMBED), 0.5),
        # LSTM weights stored transposed, gate order (i, f, o, g); b = b_ih + b_hh.
        # (PyTorch stores (i, f, g, o); same cell math, different column order for
        #  these random stand-in weights.)
        "wih_t": n(ks[7], (EMBED, GATES)),
        "whh_t": n(ks[8], (HIDDEN, GATES)),
        "b": n(ks[9], (1, GATES)),
        # final Linear(hidden -> vocab)
        "wout": n(ks[10], (HIDDEN, VOCAB)),
        "bout": n(ks[11], (1, VOCAB)),
    }


# ------------------------------ reference (pure JAX) --------------------------
def reference_forward(images_nchw, captions, p):
    bsz, c, h, w = images_nchw.shape
    x = jnp.transpose(images_nchw, (0, 2, 3, 1)).reshape(bsz * h * w, c)
    feat = jnp.maximum(x @ p["wconv"] + p["bconv"], 0.0)
    pooled = jnp.mean(feat.reshape(bsz, h * w, C_FEAT), axis=1)
    lin = pooled @ p["wlin_t"] + p["blin"]
    mean = jnp.mean(lin, axis=0, keepdims=True)
    var = jnp.mean((lin - mean) ** 2, axis=0, keepdims=True)
    features = (lin - mean) / jnp.sqrt(var + EPS) * p["gamma"] + p["beta"]

    emb = jnp.take(p["emb_table"], captions, axis=0)                # (B, T, E)
    seq = jnp.concatenate([features[:, None, :], emb], axis=1)      # (B, T+1, E)

    def step(carry, x_t):
        h_prev, c_prev = carry
        gates = x_t @ p["wih_t"] + h_prev @ p["whh_t"] + p["b"]
        i_g = jax.nn.sigmoid(gates[:, 0 * HIDDEN:1 * HIDDEN])
        f_g = jax.nn.sigmoid(gates[:, 1 * HIDDEN:2 * HIDDEN])
        o_g = jax.nn.sigmoid(gates[:, 2 * HIDDEN:3 * HIDDEN])
        g_g = jnp.tanh(gates[:, 3 * HIDDEN:4 * HIDDEN])
        c_new = f_g * c_prev + i_g * g_g
        h_new = o_g * jnp.tanh(c_new)
        return (h_new, c_new), None

    init = (jnp.zeros((bsz, HIDDEN), jnp.float32),
            jnp.zeros((bsz, HIDDEN), jnp.float32))
    (h_last, _), _ = jax.lax.scan(step, init, jnp.transpose(seq, (1, 0, 2)))
    return h_last @ p["wout"] + p["bout"]


# ------------------------------------ main ------------------------------------
if __name__ == "__main__":
    key = jax.random.PRNGKey(0)
    k_img, k_cap, k_par = jax.random.split(key, 3)

    images = jax.random.normal(k_img, (B, C_IN, IMG_HW, IMG_HW), jnp.float32)   # NCHW
    captions = jax.random.randint(k_cap, (B, SEQ), 0, VOCAB, dtype=jnp.int32)
    params = make_params(k_par)
    wslab = pack_params(params)

    out = image_captioning_lstm_forward(images, captions, wslab)
    out = jax.block_until_ready(out)
    assert out.shape == (B, VOCAB), out.shape

    ref = reference_forward(images, captions, params)
    if not jnp.allclose(out, ref, atol=1e-2, rtol=1e-2):
        raise AssertionError("pallas output mismatch vs reference")

    print("KERNEL_OK")
</pallas_src>

<mosaic_0001>
module attributes {stable_mosaic.version = 11 : i64} {
  func.func @probe(%arg0: memref<8x128xf32, #tpu.memory_space<vmem>>, %arg1: memref<8x128xf32, #tpu.memory_space<vmem>>) attributes {dimension_semantics = [], scalar_prefetch = 0 : i64, scratch_operands = 0 : i64, tpu.core_type = #tpu.core_type<tc>} {
    %c0 = arith.constant 0 : index
    %c0_0 = arith.constant 0 : index
    %0 = vector.load %arg0[%c0, %c0_0] : memref<8x128xf32, #tpu.memory_space<vmem>>, vector<8x128xf32>
    %c32_i32 = arith.constant 32 : i32
    %1 = tpu.dynamic_rotate %0 by %c32_i32 dim 1 : vector<8x128xf32>, i32 -> vector<8x128xf32>
    %c0_1 = arith.constant 0 : index
    %c0_2 = arith.constant 0 : index
    %2 = vector.load %arg1[%c0_1, %c0_2] : memref<8x128xf32, #tpu.memory_space<vmem>>, vector<8x128xf32>
    tpu.vector_store %arg1[%c0_1, %c0_2], %1 {strides = array<i32>} : memref<8x128xf32, #tpu.memory_space<vmem>>, vector<8x128xf32>,
    return
  }
}

module attributes {stable_mosaic.version = 11 : i64} {
  func.func @_fused_kernel(%arg0: memref<512x8xf32, #tpu.memory_space<vmem>>, %arg1: memref<64x1xi32, #tpu.memory_space<vmem>>, %arg2: memref<592x128xf32, #tpu.memory_space<vmem>>, %arg3: memref<8x128xf32, #tpu.memory_space<vmem>>) attributes {dimension_semantics = [], scalar_prefetch = 0 : i64, scratch_operands = 0 : i64, tpu.core_type = #tpu.core_type<tc>} {
    %c8 = arith.constant 8 : index
    %c0 = arith.constant 0 : index
    %0 = vector.load %arg2[%c8, %c0] : memref<592x128xf32, #tpu.memory_space<vmem>>, vector<8x128xf32>
    %c0_0 = arith.constant 0 : index
    %c0_1 = arith.constant 0 : index
    %1 = vector.load %arg0[%c0_0, %c0_1] : memref<512x8xf32, #tpu.memory_space<vmem>>, vector<512x8xf32>
    %c0_2 = arith.constant 0 : index
    %c0_3 = arith.constant 0 : index
    %2 = vector.load %arg2[%c0_2, %c0_3] : memref<592x128xf32, #tpu.memory_space<vmem>>, vector<8x128xf32>
    %cst = arith.constant dense<0.000000e+00> : vector<512x128xf32>
    %3 = tpu.matmul %1, %2, %cst {dimension_numbers = #tpu.dot_dimension_numbers<[1], [0], [0], [1], [0, 0, 1, 1], [], []>} : vector<512x8xf32>, vector<8x128xf32>, vector<512x128xf32> -> vector<512x128xf32>
    %4 = vector.extract_strided_slice %0 {offsets = [0, 0], sizes = [1, 128], strides = [1, 1]} : vector<8x128xf32> to vector<1x128xf32>
    %5 = vector.broadcast %4 : vector<1x128xf32> to vector<512x128xf32>
    %6 = arith.addf %3, %5 : vector<512x128xf32>
    %cst_4 = arith.constant 0.000000e+00 : f32
    %7 = vector.broadcast %cst_4 : f32 to vector<512x128xf32>
    %8 = arith.maximumf %6, %7 : vector<512x128xf32>
    %9 = tpu.iota {dimensions = array<i32: 0>} : vector<8x512xi32>
    %10 = tpu.iota {dimensions = array<i32: 1>} : vector<8x512xi32>
    %c256_i32 = arith.constant 256 : i32
    %11 = vector.broadcast %c256_i32 : i32 to vector<8x512xi32>
    %12 = arith.muli %9, %11 : vector<8x512xi32>
    %13 = arith.cmpi sge, %10, %12 : vector<8x512xi32>
    %c256_i32_5 = arith.constant 256 : i32
    %14 = vector.broadcast %c256_i32_5 : i32 to vector<8x512xi32>
    %15 = arith.muli %9, %14 : vector<8x512xi32>
    %c256_i32_6 = arith.constant 256 : i32
    %16 = vector.broadcast %c256_i32_6 : i32 to vector<8x512xi32>
    %17 = arith.addi %15, %16 : vector<8x512xi32>
    %18 = arith.cmpi slt, %10, %17 : vector<8x512xi32>
    %19 = arith.andi %13, %18 : vector<8x512xi1>
    %cst_7 = arith.constant 3.906250e-03 : f32
    %cst_8 = arith.constant 0.000000e+00 : f32
    %20 = vector.broadcast %cst_7 : f32 to vector<8x512xf32>
    %21 = vector.broadcast %cst_8 : f32 to vector<8x512xf32>
    %22 = arith.select %19, %20, %21 : vector<8x512xi1>, vector<8x512xf32>
    %cst_9 = arith.constant dense<0.000000e+00> : vector<8x128xf32>
    %23 = tpu.matmul %22, %8, %cst_9 {dimension_numbers = #tpu.dot_dimension_numbers<[1], [0], [0], [1], [0, 0, 1, 1], [], []>} : vector<8x512xf32>, vector<512x128xf32>, vector<8x128xf32> -> vector<8x128xf32>
    %c16 = arith.constant 16 : index
    %c0_10 = arith.constant 0 : index
    %24 = vector.load %arg2[%c16, %c0_10] : memref<592x128xf32, #tpu.memory_space<vmem>>, vector<128x128xf32>
    %cst_11 = arith.constant dense<0.000000e+00> : vector<8x128xf32>
    %25 = tpu.matmul %23, %24, %cst_11 {dimension_numbers = #tpu.dot_dimension_numbers<[1], [0], [0], [1], [0, 0, 1, 1], [], []>} : vector<8x128xf32>, vector<128x128xf32>, vector<8x128xf32> -> vector<8x128xf32>
    %26 = vector.extract_strided_slice %25 {offsets = [0, 0], sizes = [2, 128], strides = [1, 1]} : vector<8x128xf32> to vector<2x128xf32>
    %cst_12 = arith.constant dense<0.000000e+00> : vector<128xf32>
    %27 = vector.multi_reduction <add>, %26, %cst_12 [0] : vector<2x128xf32> to vector<128xf32>
    %28 = vector.shape_cast %27 : vector<128xf32> to vector<1x128xf32>
    %cst_13 = arith.constant 2.000000e+00 : f32
    %29 = vector.broadcast %cst_13 : f32 to vector<1x128xf32>
    %30 = arith.divf %28, %29 : vector<1x128xf32>
    %31 = vector.broadcast %30 : vector<1x128xf32> to vector<2x128xf32>
    %32 = arith.subf %26, %31 : vector<2x128xf32>
    %33 = arith.mulf %32, %32 : vector<2x128xf32>
    %cst_14 = arith.constant dense<0.000000e+00> : vector<128xf32>
    %34 = vector.multi_reduction <add>, %33, %cst_14 [0] : vector<2x128xf32> to vector<128xf32>
    %35 = vector.shape_cast %34 : vector<128xf32> to vector<1x128xf32>
    %cst_15 = arith.constant 2.000000e+00 : f32
    %36 = vector.broadcast %cst_15 : f32 to vector<1x128xf32>
    %37 = arith.divf %35, %36 : vector<1x128xf32>
    %38 = vector.broadcast %30 : vector<1x128xf32> to vector<8x128xf32>
    %39 = arith.subf %25, %38 : vector<8x128xf32>
    %cst_16 = arith.constant 9.99999974E-6 : f32
    %40 = vector.broadcast %cst_16 : f32 to vector<1x128xf32>
    %41 = arith.addf %37, %40 : vector<1x128xf32>
    %42 = math.rsqrt %41 : vector<1x128xf32>
    %43 = vector.broadcast %42 : vector<1x128xf32> to vector<8x128xf32>
    %44 = arith.mulf %39, %43 : vector<8x128xf32>
    %c144 = arith.constant 144 : index
    %c0_17 = arith.constant 0 : index
    %45 = vector.load %arg2[%c144, %c0_17] : memref<592x128xf32, #tpu.memory_space<vmem>>, vector<128x128xf32>
    %cst_18 = arith.constant dense<0.000000e+00> : vector<8x128xf32>
    %46 = tpu.matmul %44, %45, %cst_18 {dimension_numbers = #tpu.dot_dimension_numbers<[1], [0], [0], [1], [0, 0, 1, 1], [], []>} : vector<8x128xf32>, vector<128x128xf32>, vector<8x128xf32> -> vector<8x128xf32>
    %47 = vector.extract_strided_slice %0 {offsets = [1, 0], sizes = [1, 128], strides = [1, 1]} : vector<8x128xf32> to vector<1x128xf32>
    %48 = vector.broadcast %47 : vector<1x128xf32> to vector<8x128xf32>
    %49 = arith.addf %46, %48 : vector<8x128xf32>
    %c0_19 = arith.constant 0 : index
    %c0_20 = arith.constant 0 : index
    %50 = vector.load %arg1[%c0_19, %c0_20] : memref<64x1xi32, #tpu.memory_space<vmem>>, vector<64x1xi32>
    %51 = tpu.iota {dimensions = array<i32: 1>} : vector<64x64xi32>
    %52 = vector.broadcast %50 : vector<64x1xi32> to vector<64x64xi32>
    %53 = arith.cmpi eq, %51, %52 : vector<64x64xi32>
    %54 = arith.extui %53 : vector<64x64xi1> to vector<64x64xi32>
    %55 = arith.sitofp %54 : vector<64x64xi32> to vector<64x64xf32>
    %c272 = arith.constant 272 : index
    %c0_21 = arith.constant 0 : index
    %56 = vector.load %arg2[%c272, %c0_21] : memref<592x128xf32, #tpu.memory_space<vmem>>, vector<64x128xf32>
    %cst_22 = arith.constant dense<0.000000e+00> : vector<64x128xf32>
    %57 = tpu.matmul %55, %56, %cst_22 {dimension_numbers = #tpu.dot_dimension_numbers<[1], [0], [0], [1], [0, 0, 1, 1], [], []>} : vector<64x64xf32>, vector<64x128xf32>, vector<64x128xf32> -> vector<64x128xf32>
    %c336 = arith.constant 336 : index
    %c0_23 = arith.constant 0 : index
    %58 = vector.load %arg2[%c336, %c0_23] : memref<592x128xf32, #tpu.memory_space<vmem>>, vector<128x128xf32>
    %cst_24 = arith.constant 0.000000e+00 : f32
    %59 = vector.broadcast %cst_24 : f32 to vector<8x128xf32>
    %60 = arith.negf %49 : vector<8x128xf32>
    %61 = math.exp %60 : vector<8x128xf32>
    %cst_25 = arith.constant 1.000000e+00 : f32
    %62 = vector.broadcast %cst_25 : f32 to vector<8x128xf32>
    %63 = arith.addf %62, %61 : vector<8x128xf32>
    %64 = arith.divf %62, %63 : vector<8x128xf32>
    %65 = math.tanh %49 : vector<8x128xf32>
    %66 = vector.extract_strided_slice %64 {offsets = [0, 32], sizes = [8, 96], strides = [1, 1]} : vector<8x128xf32> to vector<8x96xf32>
    %67 = vector.extract_strided_slice %64 {offsets = [0, 0], sizes = [8, 32], strides = [1, 1]} : vector<8x128xf32> to vector<8x32xf32>
    %68 = tpu.concatenate %66, %67 in 1 : vector<8x96xf32>, vector<8x32xf32> -> vector<8x128xf32>
    %69 = vector.extract_strided_slice %64 {offsets = [0, 64], sizes = [8, 64], strides = [1, 1]} : vector<8x128xf32> to vector<8x64xf32>
    %70 = vector.extract_strided_slice %64 {offsets = [0, 0], sizes = [8, 64], strides = [1, 1]} : vector<8x128xf32> to vector<8x64xf32>
    %71 = tpu.concatenate %69, %70 in 1 : vector<8x64xf32>, vector<8x64xf32> -> vector<8x128xf32>
    %72 = vector.extract_strided_slice %65 {offsets = [0, 96], sizes = [8, 32], strides = [1, 1]} : vector<8x128xf32> to vector<8x32xf32>
    %73 = vector.extract_strided_slice %65 {offsets = [0, 0], sizes = [8, 96], strides = [1, 1]} : vector<8x128xf32> to vector<8x96xf32>
    %74 = tpu.concatenate %72, %73 in 1 : vector<8x32xf32>, vector<8x96xf32> -> vector<8x128xf32>
    %75 = arith.mulf %68, %59 : vector<8x128xf32>
    %76 = arith.mulf %64, %74 : vector<8x128xf32>
    %77 = arith.addf %75, %76 : vector<8x128xf32>
    %78 = math.tanh %77 : vector<8x128xf32>
    %79 = arith.mulf %71, %78 : vector<8x128xf32>
    %80 = vector.extract_strided_slice %57 {offsets = [0, 0], sizes = [8, 128], strides = [1, 1]} : vector<64x128xf32> to vector<8x128xf32>
    %cst_26 = arith.constant dense<0.000000e+00> : vector<8x128xf32>
    %81 = tpu.matmul %79, %58, %cst_26 {dimension_numbers = #tpu.dot_dimension_numbers<[1], [0], [0], [1], [0, 0, 1, 1], [], []>} : vector<8x128xf32>, vector<128x128xf32>, vector<8x128xf32> -> vector<8x128xf32>
    %82 = arith.addf %80, %81 : vector<8x128xf32>
    %83 = arith.negf %82 : vector<8x128xf32>
    %84 = math.exp %83 : vector<8x128xf32>
    %cst_27 = arith.constant 1.000000e+00 : f32
    %85 = vector.broadcast %cst_27 : f32 to vector<8x128xf32>
    %86 = arith.addf %85, %84 : vector<8x128xf32>
    %87 = arith.divf %85, %86 : vector<8x128xf32>
    %88 = math.tanh %82 : vector<8x128xf32>
    %89 = vector.extract_strided_slice %87 {offsets = [0, 32], sizes = [8, 96], strides = [1, 1]} : vector<8x128xf32> to vector<8x96xf32>
    %90 = vector.extract_strided_slice %87 {offsets = [0, 0], sizes = [8, 32], strides = [1, 1]} : vector<8x128xf32> to vector<8x32xf32>
    %91 = tpu.concatenate %89, %90 in 1 : vector<8x96xf32>, vector<8x32xf32> -> vector<8x128xf32>
    %92 = vector.extract_strided_slice %87 {offsets = [0, 64], sizes = [8, 64], strides = [1, 1]} : vector<8x128xf32> to vector<8x64xf32>
    %93 = vector.extract_strided_slice %87 {offsets = [0, 0], sizes = [8, 64], strides = [1, 1]} : vector<8x128xf32> to vector<8x64xf32>
    %94 = tpu.concatenate %92, %93 in 1 : vector<8x64xf32>, vector<8x64xf32> -> vector<8x128xf32>
    %95 = vector.extract_strided_slice %88 {offsets = [0, 96], sizes = [8, 32], strides = [1, 1]} : vector<8x128xf32> to vector<8x32xf32>
    %96 = vector.extract_strided_slice %88 {offsets = [0, 0], sizes = [8, 96], strides = [1, 1]} : vector<8x128xf32> to vector<8x96xf32>
    %97 = tpu.concatenate %95, %96 in 1 : vector<8x32xf32>, vector<8x96xf32> -> vector<8x128xf32>
    %98 = arith.mulf %91, %77 : vector<8x128xf32>
    %99 = arith.mulf %87, %97 : vector<8x128xf32>
    %100 = arith.addf %98, %99 : vector<8x128xf32>
    %101 = math.tanh %100 : vector<8x128xf32>
    %102 = arith.mulf %94, %101 : vector<8x128xf32>
    %103 = vector.extract_strided_slice %57 {offsets = [8, 0], sizes = [8, 128], strides = [1, 1]} : vector<64x128xf32> to vector<8x128xf32>
    %cst_28 = arith.constant dense<0.000000e+00> : vector<8x128xf32>
    %104 = tpu.matmul %102, %58, %cst_28 {dimension_numbers = #tpu.dot_dimension_numbers<[1], [0], [0], [1], [0, 0, 1, 1], [], []>} : vector<8x128xf32>, vector<128x128xf32>, vector<8x128xf32> -> vector<8x128xf32>
    %105 = arith.addf %103, %104 : vector<8x128xf32>
    %106 = arith.negf %105 : vector<8x128xf32>
    %107 = math.exp %106 : vector<8x128xf32>
    %cst_29 = arith.constant 1.000000e+00 : f32
    %108 = vector.broadcast %cst_29 : f32 to vector<8x128xf32>
    %109 = arith.addf %108, %107 : vector<8x128xf32>
    %110 = arith.divf %108, %109 : vector<8x128xf32>
    %111 = math.tanh %105 : vector<8x128xf32>
    %112 = vector.extract_strided_slice %110 {offsets = [0, 32], sizes = [8, 96], strides = [1, 1]} : vector<8x128xf32> to vector<8x96xf32>
    %113 = vector.extract_strided_slice %110 {offsets = [0, 0], sizes = [8, 32], strides = [1, 1]} : vector<8x128xf32> to vector<8x32xf32>
    %114 = tpu.concatenate %112, %113 in 1 : vector<8x96xf32>, vector<8x32xf32> -> vector<8x128xf32>
    %115 = vector.extract_strided_slice %110 {offsets = [0, 64], sizes = [8, 64], strides = [1, 1]} : vector<8x128xf32> to vector<8x64xf32>
    %116 = vector.extract_strided_slice %110 {offsets = [0, 0], sizes = [8, 64], strides = [1, 1]} : vector<8x128xf32> to vector<8x64xf32>
    %117 = tpu.concatenate %115, %116 in 1 : vector<8x64xf32>, vector<8x64xf32> -> vector<8x128xf32>
    %118 = vector.extract_strided_slice %111 {offsets = [0, 96], sizes = [8, 32], strides = [1, 1]} : vector<8x128xf32> to vector<8x32xf32>
    %119 = vector.extract_strided_slice %111 {offsets = [0, 0], sizes = [8, 96], strides = [1, 1]} : vector<8x128xf32> to vector<8x96xf32>
    %120 = tpu.concatenate %118, %119 in 1 : vector<8x32xf32>, vector<8x96xf32> -> vector<8x128xf32>
    %121 = arith.mulf %114, %100 : vector<8x128xf32>
    %122 = arith.mulf %110, %120 : vector<8x128xf32>
    %123 = arith.addf %121, %122 : vector<8x128xf32>
    %124 = math.tanh %123 : vector<8x128xf32>
    %125 = arith.mulf %117, %124 : vector<8x128xf32>
    %126 = vector.extract_strided_slice %57 {offsets = [16, 0], sizes = [8, 128], strides = [1, 1]} : vector<64x128xf32> to vector<8x128xf32>
    %cst_30 = arith.constant dense<0.000000e+00> : vector<8x128xf32>
    %127 = tpu.matmul %125, %58, %cst_30 {dimension_numbers = #tpu.dot_dimension_numbers<[1], [0], [0], [1], [0, 0, 1, 1], [], []>} : vector<8x128xf32>, vector<128x128xf32>, vector<8x128xf32> -> vector<8x128xf32>
    %128 = arith.addf %126, %127 : vector<8x128xf32>
    %129 = arith.negf %128 : vector<8x128xf32>
    %130 = math.exp %129 : vector<8x128xf32>
    %cst_31 = arith.constant 1.000000e+00 : f32
    %131 = vector.broadcast %cst_31 : f32 to vector<8x128xf32>
    %132 = arith.addf %131, %130 : vector<8x128xf32>
    %133 = arith.divf %131, %132 : vector<8x128xf32>
    %134 = math.tanh %128 : vector<8x128xf32>
    %135 = vector.extract_strided_slice %133 {offsets = [0, 32], sizes = [8, 96], strides = [1, 1]} : vector<8x128xf32> to vector<8x96xf32>
    %136 = vector.extract_strided_slice %133 {offsets = [0, 0], sizes = [8, 32], strides = [1, 1]} : vector<8x128xf32> to vector<8x32xf32>
    %137 = tpu.concatenate %135, %136 in 1 : vector<8x96xf32>, vector<8x32xf32> -> vector<8x128xf32>
    %138 = vector.extract_strided_slice %133 {offsets = [0, 64], sizes = [8, 64], strides = [1, 1]} : vector<8x128xf32> to vector<8x64xf32>
    %139 = vector.extract_strided_slice %133 {offsets = [0, 0], sizes = [8, 64], strides = [1, 1]} : vector<8x128xf32> to vector<8x64xf32>
    %140 = tpu.concatenate %138, %139 in 1 : vector<8x64xf32>, vector<8x64xf32> -> vector<8x128xf32>
    %141 = vector.extract_strided_slice %134 {offsets = [0, 96], sizes = [8, 32], strides = [1, 1]} : vector<8x128xf32> to vector<8x32xf32>
    %142 = vector.extract_strided_slice %134 {offsets = [0, 0], sizes = [8, 96], strides = [1, 1]} : vector<8x128xf32> to vector<8x96xf32>
    %143 = tpu.concatenate %141, %142 in 1 : vector<8x32xf32>, vector<8x96xf32> -> vector<8x128xf32>
    %144 = arith.mulf %137, %123 : vector<8x128xf32>
    %145 = arith.mulf %133, %143 : vector<8x128xf32>
    %146 = arith.addf %144, %145 : vector<8x128xf32>
    %147 = math.tanh %146 : vector<8x128xf32>
    %148 = arith.mulf %140, %147 : vector<8x128xf32>
    %149 = vector.extract_strided_slice %57 {offsets = [24, 0], sizes = [8, 128], strides = [1, 1]} : vector<64x128xf32> to vector<8x128xf32>
    %cst_32 = arith.constant dense<0.000000e+00> : vector<8x128xf32>
    %150 = tpu.matmul %148, %58, %cst_32 {dimension_numbers = #tpu.dot_dimension_numbers<[1], [0], [0], [1], [0, 0, 1, 1], [], []>} : vector<8x128xf32>, vector<128x128xf32>, vector<8x128xf32> -> vector<8x128xf32>
    %151 = arith.addf %149, %150 : vector<8x128xf32>
    %152 = arith.negf %151 : vector<8x128xf32>
    %153 = math.exp %152 : vector<8x128xf32>
    %cst_33 = arith.constant 1.000000e+00 : f32
    %154 = vector.broadcast %cst_33 : f32 to vector<8x128xf32>
    %155 = arith.addf %154, %153 : vector<8x128xf32>
    %156 = arith.divf %154, %155 : vector<8x128xf32>
    %157 = math.tanh %151 : vector<8x128xf32>
    %158 = vector.extract_strided_slice %156 {offsets = [0, 32], sizes = [8, 96], strides = [1, 1]} : vector<8x128xf32> to vector<8x96xf32>
    %159 = vector.extract_strided_slice %156 {offsets = [0, 0], sizes = [8, 32], strides = [1, 1]} : vector<8x128xf32> to vector<8x32xf32>
    %160 = tpu.concatenate %158, %159 in 1 : vector<8x96xf32>, vector<8x32xf32> -> vector<8x128xf32>
    %161 = vector.extract_strided_slice %156 {offsets = [0, 64], sizes = [8, 64], strides = [1, 1]} : vector<8x128xf32> to vector<8x64xf32>
    %162 = vector.extract_strided_slice %156 {offsets = [0, 0], sizes = [8, 64], strides = [1, 1]} : vector<8x128xf32> to vector<8x64xf32>
    %163 = tpu.concatenate %161, %162 in 1 : vector<8x64xf32>, vector<8x64xf32> -> vector<8x128xf32>
    %164 = vector.extract_strided_slice %157 {offsets = [0, 96], sizes = [8, 32], strides = [1, 1]} : vector<8x128xf32> to vector<8x32xf32>
    %165 = vector.extract_strided_slice %157 {offsets = [0, 0], sizes = [8, 96], strides = [1, 1]} : vector<8x128xf32> to vector<8x96xf32>
    %166 = tpu.concatenate %164, %165 in 1 : vector<8x32xf32>, vector<8x96xf32> -> vector<8x128xf32>
    %167 = arith.mulf %160, %146 : vector<8x128xf32>
    %168 = arith.mulf %156, %166 : vector<8x128xf32>
    %169 = arith.addf %167, %168 : vector<8x128xf32>
    %170 = math.tanh %169 : vector<8x128xf32>
    %171 = arith.mulf %163, %170 : vector<8x128xf32>
    %172 = vector.extract_strided_slice %57 {offsets = [32, 0], sizes = [8, 128], strides = [1, 1]} : vector<64x128xf32> to vector<8x128xf32>
    %cst_34 = arith.constant dense<0.000000e+00> : vector<8x128xf32>
    %173 = tpu.matmul %171, %58, %cst_34 {dimension_numbers = #tpu.dot_dimension_numbers<[1], [0], [0], [1], [0, 0, 1, 1], [], []>} : vector<8x128xf32>, vector<128x128xf32>, vector<8x128xf32> -> vector<8x128xf32>
    %174 = arith.addf %172, %173 : vector<8x128xf32>
    %175 = arith.negf %174 : vector<8x128xf32>
    %176 = math.exp %175 : vector<8x128xf32>
    %cst_35 = arith.constant 1.000000e+00 : f32
    %177 = vector.broadcast %cst_35 : f32 to vector<8x128xf32>
    %178 = arith.addf %177, %176 : vector<8x128xf32>
    %179 = arith.divf %177, %178 : vector<8x128xf32>
    %180 = math.tanh %174 : vector<8x128xf32>
    %181 = vector.extract_strided_slice %179 {offsets = [0, 32], sizes = [8, 96], strides = [1, 1]} : vector<8x128xf32> to vector<8x96xf32>
    %182 = vector.extract_strided_slice %179 {offsets = [0, 0], sizes = [8, 32], strides = [1, 1]} : vector<8x128xf32> to vector<8x32xf32>
    %183 = tpu.concatenate %181, %182 in 1 : vector<8x96xf32>, vector<8x32xf32> -> vector<8x128xf32>
    %184 = vector.extract_strided_slice %179 {offsets = [0, 64], sizes = [8, 64], strides = [1, 1]} : vector<8x128xf32> to vector<8x64xf32>
    %185 = vector.extract_strided_slice %179 {offsets = [0, 0], sizes = [8, 64], strides = [1, 1]} : vector<8x128xf32> to vector<8x64xf32>
    %186 = tpu.concatenate %184, %185 in 1 : vector<8x64xf32>, vector<8x64xf32> -> vector<8x128xf32>
    %187 = vector.extract_strided_slice %180 {offsets = [0, 96], sizes = [8, 32], strides = [1, 1]} : vector<8x128xf32> to vector<8x32xf32>
    %188 = vector.extract_strided_slice %180 {offsets = [0, 0], sizes = [8, 96], strides = [1, 1]} : vector<8x128xf32> to vector<8x96xf32>
    %189 = tpu.concatenate %187, %188 in 1 : vector<8x32xf32>, vector<8x96xf32> -> vector<8x128xf32>
    %190 = arith.mulf %183, %169 : vector<8x128xf32>
    %191 = arith.mulf %179, %189 : vector<8x128xf32>
    %192 = arith.addf %190, %191 : vector<8x128xf32>
    %193 = math.tanh %192 : vector<8x128xf32>
    %194 = arith.mulf %186, %193 : vector<8x128xf32>
    %195 = vector.extract_strided_slice %57 {offsets = [40, 0], sizes = [8, 128], strides = [1, 1]} : vector<64x128xf32> to vector<8x128xf32>
    %cst_36 = arith.constant dense<0.000000e+00> : vector<8x128xf32>
    %196 = tpu.matmul %194, %58, %cst_36 {dimension_numbers = #tpu.dot_dimension_numbers<[1], [0], [0], [1], [0, 0, 1, 1], [], []>} : vector<8x128xf32>, vector<128x128xf32>, vector<8x128xf32> -> vector<8x128xf32>
    %197 = arith.addf %195, %196 : vector<8x128xf32>
    %198 = arith.negf %197 : vector<8x128xf32>
    %199 = math.exp %198 : vector<8x128xf32>
    %cst_37 = arith.constant 1.000000e+00 : f32
    %200 = vector.broadcast %cst_37 : f32 to vector<8x128xf32>
    %201 = arith.addf %200, %199 : vector<8x128xf32>
    %202 = arith.divf %200, %201 : vector<8x128xf32>
    %203 = math.tanh %197 : vector<8x128xf32>
    %204 = vector.extract_strided_slice %202 {offsets = [0, 32], sizes = [8, 96], strides = [1, 1]} : vector<8x128xf32> to vector<8x96xf32>
    %205 = vector.extract_strided_slice %202 {offsets = [0, 0], sizes = [8, 32], strides = [1, 1]} : vector<8x128xf32> to vector<8x32xf32>
    %206 = tpu.concatenate %204, %205 in 1 : vector<8x96xf32>, vector<8x32xf32> -> vector<8x128xf32>
    %207 = vector.extract_strided_slice %202 {offsets = [0, 64], sizes = [8, 64], strides = [1, 1]} : vector<8x128xf32> to vector<8x64xf32>
    %208 = vector.extract_strided_slice %202 {offsets = [0, 0], sizes = [8, 64], strides = [1, 1]} : vector<8x128xf32> to vector<8x64xf32>
    %209 = tpu.concatenate %207, %208 in 1 : vector<8x64xf32>, vector<8x64xf32> -> vector<8x128xf32>
    %210 = vector.extract_strided_slice %203 {offsets = [0, 96], sizes = [8, 32], strides = [1, 1]} : vector<8x128xf32> to vector<8x32xf32>
    %211 = vector.extract_strided_slice %203 {offsets = [0, 0], sizes = [8, 96], strides = [1, 1]} : vector<8x128xf32> to vector<8x96xf32>
    %212 = tpu.concatenate %210, %211 in 1 : vector<8x32xf32>, vector<8x96xf32> -> vector<8x128xf32>
    %213 = arith.mulf %206, %192 : vector<8x128xf32>
    %214 = arith.mulf %202, %212 : vector<8x128xf32>
    %215 = arith.addf %213, %214 : vector<8x128xf32>
    %216 = math.tanh %215 : vector<8x128xf32>
    %217 = arith.mulf %209, %216 : vector<8x128xf32>
    %218 = vector.extract_strided_slice %57 {offsets = [48, 0], sizes = [8, 128], strides = [1, 1]} : vector<64x128xf32> to vector<8x128xf32>
    %cst_38 = arith.constant dense<0.000000e+00> : vector<8x128xf32>
    %219 = tpu.matmul %217, %58, %cst_38 {dimension_numbers = #tpu.dot_dimension_numbers<[1], [0], [0], [1], [0, 0, 1, 1], [], []>} : vector<8x128xf32>, vector<128x128xf32>, vector<8x128xf32> -> vector<8x128xf32>
    %220 = arith.addf %218, %219 : vector<8x128xf32>
    %221 = arith.negf %220 : vector<8x128xf32>
    %222 = math.exp %221 : vector<8x128xf32>
    %cst_39 = arith.constant 1.000000e+00 : f32
    %223 = vector.broadcast %cst_39 : f32 to vector<8x128xf32>
    %224 = arith.addf %223, %222 : vector<8x128xf32>
    %225 = arith.divf %223, %224 : vector<8x128xf32>
    %226 = math.tanh %220 : vector<8x128xf32>
    %227 = vector.extract_strided_slice %225 {offsets = [0, 32], sizes = [8, 96], strides = [1, 1]} : vector<8x128xf32> to vector<8x96xf32>
    %228 = vector.extract_strided_slice %225 {offsets = [0, 0], sizes = [8, 32], strides = [1, 1]} : vector<8x128xf32> to vector<8x32xf32>
    %229 = tpu.concatenate %227, %228 in 1 : vector<8x96xf32>, vector<8x32xf32> -> vector<8x128xf32>
    %230 = vector.extract_strided_slice %225 {offsets = [0, 64], sizes = [8, 64], strides = [1, 1]} : vector<8x128xf32> to vector<8x64xf32>
    %231 = vector.extract_strided_slice %225 {offsets = [0, 0], sizes = [8, 64], strides = [1, 1]} : vector<8x128xf32> to vector<8x64xf32>
    %232 = tpu.concatenate %230, %231 in 1 : vector<8x64xf32>, vector<8x64xf32> -> vector<8x128xf32>
    %233 = vector.extract_strided_slice %226 {offsets = [0, 96], sizes = [8, 32], strides = [1, 1]} : vector<8x128xf32> to vector<8x32xf32>
    %234 = vector.extract_strided_slice %226 {offsets = [0, 0], sizes = [8, 96], strides = [1, 1]} : vector<8x128xf32> to vector<8x96xf32>
    %235 = tpu.concatenate %233, %234 in 1 : vector<8x32xf32>, vector<8x96xf32> -> vector<8x128xf32>
    %236 = arith.mulf %229, %215 : vector<8x128xf32>
    %237 = arith.mulf %225, %235 : vector<8x128xf32>
    %238 = arith.addf %236, %237 : vector<8x128xf32>
    %239 = math.tanh %238 : vector<8x128xf32>
    %240 = arith.mulf %232, %239 : vector<8x128xf32>
    %241 = vector.extract_strided_slice %57 {offsets = [56, 0], sizes = [8, 128], strides = [1, 1]} : vector<64x128xf32> to vector<8x128xf32>
    %cst_40 = arith.constant dense<0.000000e+00> : vector<8x128xf32>
    %242 = tpu.matmul %240, %58, %cst_40 {dimension_numbers = #tpu.dot_dimension_numbers<[1], [0], [0], [1], [0, 0, 1, 1], [], []>} : vector<8x128xf32>, vector<128x128xf32>, vector<8x128xf32> -> vector<8x128xf32>
    %243 = arith.addf %241, %242 : vector<8x128xf32>
    %244 = arith.negf %243 : vector<8x128xf32>
    %245 = math.exp %244 : vector<8x128xf32>
    %cst_41 = arith.constant 1.000000e+00 : f32
    %246 = vector.broadcast %cst_41 : f32 to vector<8x128xf32>
    %247 = arith.addf %246, %245 : vector<8x128xf32>
    %248 = arith.divf %246, %247 : vector<8x128xf32>
    %249 = math.tanh %243 : vector<8x128xf32>
    %250 = vector.extract_strided_slice %248 {offsets = [0, 32], sizes = [8, 96], strides = [1, 1]} : vector<8x128xf32> to vector<8x96xf32>
    %251 = vector.extract_strided_slice %248 {offsets = [0, 0], sizes = [8, 32], strides = [1, 1]} : vector<8x128xf32> to vector<8x32xf32>
    %252 = tpu.concatenate %250, %251 in 1 : vector<8x96xf32>, vector<8x32xf32> -> vector<8x128xf32>
    %253 = vector.extract_strided_slice %248 {offsets = [0, 64], sizes = [8, 64], strides = [1, 1]} : vector<8x128xf32> to vector<8x64xf32>
    %254 = vector.extract_strided_slice %248 {offsets = [0, 0], sizes = [8, 64], strides = [1, 1]} : vector<8x128xf32> to vector<8x64xf32>
    %255 = tpu.concatenate %253, %254 in 1 : vector<8x64xf32>, vector<8x64xf32> -> vector<8x128xf32>
    %256 = vector.extract_strided_slice %249 {offsets = [0, 96], sizes = [8, 32], strides = [1, 1]} : vector<8x128xf32> to vector<8x32xf32>
    %257 = vector.extract_strided_slice %249 {offsets = [0, 0], sizes = [8, 96], strides = [1, 1]} : vector<8x128xf32> to vector<8x96xf32>
    %258 = tpu.concatenate %256, %257 in 1 : vector<8x32xf32>, vector<8x96xf32> -> vector<8x128xf32>
    %259 = arith.mulf %252, %238 : vector<8x128xf32>
    %260 = arith.mulf %248, %258 : vector<8x128xf32>
    %261 = arith.addf %259, %260 : vector<8x128xf32>
    %262 = math.tanh %261 : vector<8x128xf32>
    %263 = arith.mulf %255, %262 : vector<8x128xf32>
    %c464 = arith.constant 464 : index
    %c0_42 = arith.constant 0 : index
    %264 = vector.load %arg2[%c464, %c0_42] : memref<592x128xf32, #tpu.memory_space<vmem>>, vector<128x128xf32>
    %cst_43 = arith.constant dense<0.000000e+00> : vector<8x128xf32>
    %265 = tpu.matmul %263, %264, %cst_43 {dimension_numbers = #tpu.dot_dimension_numbers<[1], [0], [0], [1], [0, 0, 1, 1], [], []>} : vector<8x128xf32>, vector<128x128xf32>, vector<8x128xf32> -> vector<8x128xf32>
    %266 = vector.extract_strided_slice %0 {offsets = [2, 0], sizes = [1, 128], strides = [1, 1]} : vector<8x128xf32> to vector<1x128xf32>
    %267 = vector.broadcast %266 : vector<1x128xf32> to vector<8x128xf32>
    %268 = arith.addf %265, %267 : vector<8x128xf32>
    %c0_44 = arith.constant 0 : index
    %c0_45 = arith.constant 0 : index
    %269 = vector.load %arg3[%c0_44, %c0_45] : memref<8x128xf32, #tpu.memory_space<vmem>>, vector<8x128xf32>
    tpu.vector_store %arg3[%c0_44, %c0_45], %268 {strides = array<i32>} : memref<8x128xf32, #tpu.memory_space<vmem>>, vector<8x128xf32>,
    return
  }
}

</mosaic_0001>

<llo_original>
// kernel: tpu_custom_call.1
$region0: #{tpu_custom_call.1}
  #allocation0 [shape = 'u32[]', space=smem, size = 0x4, offset = 0x4, fixed_abs, tag = 'smem constant byte address 0x4 - core index']
  #allocation1 [shape = 'u32[72,128]{1,0:T(1,128)}', space=vmem, size = 0x9000, scoped, tag = 'internal scratch']
  %s0 = inlined_call_operand.hbm [shape: f32[8,128], index: 0, kind: input, shape index: {}]
  %s1 = inlined_call_operand.hbm [shape: f32[8,128], index: 1, kind: output, shape index: {}]
  %s2 = sld [smem:[#allocation0]]
  $region18: #{tpu_custom_call.1} parent=0
    _
  %s4 = ssub.s32 1, %s2
  %s5 = scalar_select 0, %s4, %s2
  $region1: #{tpu_custom_call.1} parent=0
    #allocation2 [shape = 'u8[4096]{0}', space=vmem, size = 0x1000, scoped, tag = 'input window, operand 0, single buffered']
    #allocation3 [shape = 's32[1]{0}', space=sflag, size = 0x4, scoped, tag = 'scoped memory for tpu_custom_call.1']
    #allocation4 [shape = 's32[1]{0}', space=sflag, size = 0x4, scoped, tag = 'scoped memory for tpu_custom_call.1']
    #allocation5 [shape = 'u8[4096]{0}', space=vmem, size = 0x1000, scoped, tag = 'output window, operand 0, single buffered']
    %6 = vsyncpa [#allocation3], 0
    %7 = vsyncpa [#allocation4], 0
    // Predicated region
    $region2: #{tpu_custom_call.1} parent=1 // pred_check
      _
    $region3: #{tpu_custom_call.1} parent=1 // pred_check_branch
      %9 = sbr.rel (0) target = $region5
    $region4: #{tpu_custom_call.1} parent=1 // pred_region
      %11 = vsyncadd [#allocation3], 0
      %s13 = sshll.u32 %s0, 4
      %s14 = int_to_ptr.hbm [resolvable:$true] %s13
      %s15 = sshll.u32 [#allocation2], 4
      %s16 = int_to_ptr.vmem [resolvable:$true] %s15
      %18 = dma.hbm_to_vmem [thread:$0]  %s14, 128, %s16, [#allocation3]
    $region5: #{tpu_custom_call.1} parent=1 // pred_fallthru
      _
    // Predicated region
    $region6: #{tpu_custom_call.1} parent=1 // pred_check
      _
    $region7: #{tpu_custom_call.1} parent=1 // pred_check_branch
      %20 = sbr.rel (0) target = $region9
    $region8: #{tpu_custom_call.1} parent=1 // pred_region
      %22 = dma.done [#allocation3], 128
    $region9: #{tpu_custom_call.1} parent=1 // pred_fallthru
      _
    %v23 = vld [vmem:[#allocation2] sm:$0xff]
    %24 = vrot.lane.b32.xlu0 %v23, 32
    %v25 = vpop.permute.xlu0 %24
    %26 = vst [vmem:[#allocation5] sm:$0xff] %v25
    // Predicated region
    $region10: #{tpu_custom_call.1} parent=1 // pred_check
      _
    $region11: #{tpu_custom_call.1} parent=1 // pred_check_branch
      %28 = sbr.rel (0) target = $region13
    $region12: #{tpu_custom_call.1} parent=1 // pred_region
      %30 = vsyncadd [#allocation4], 0
      %s32 = sshll.u32 [#allocation5], 4
      %s33 = int_to_ptr.vmem [resolvable:$true] %s32
      %s34 = sshll.u32 %s1, 4
      %s35 = int_to_ptr.hbm [resolvable:$true] %s34
      %37 = dma.vmem_to_hbm [thread:$0]  %s33, 128, %s35, [#allocation4]
    $region13: #{tpu_custom_call.1} parent=1 // pred_fallthru
      _
    // Predicated region
    $region14: #{tpu_custom_call.1} parent=1 // pred_check
      _
    $region15: #{tpu_custom_call.1} parent=1 // pred_check_branch
      %39 = sbr.rel (0) target = $region17
    $region16: #{tpu_custom_call.1} parent=1 // pred_region
      %41 = dma.done [#allocation4], 128
    $region17: #{tpu_custom_call.1} parent=1 // pred_fallthru
      _
    %42 = vsyncpa [#allocation3], 1
    %43 = vsyncpa [#allocation4], 1

// kernel: image_captioning_lstm_forward.1
$region0: #{image_captioning_lstm_forward.1}
  #allocation0 [shape = 'u32[]', space=smem, size = 0x4, offset = 0x4, fixed_abs, tag = 'smem constant byte address 0x4 - core index']
  #allocation1 [shape = 'u32[72,128]{1,0:T(1,128)}', space=vmem, size = 0x9000, scoped, tag = 'internal scratch']
  %s0 = inlined_call_operand.vmem [shape: f32[512,8], index: 0, kind: input, shape index: {}]
  %s1 = inlined_call_operand.vmem [shape: s32[64,1], index: 1, kind: input, shape index: {}]
  %s2 = inlined_call_operand.vmem [shape: f32[592,128], index: 2, kind: input, shape index: {}]
  %s3 = inlined_call_operand.vmem [shape: f32[8,128], index: 3, kind: output, shape index: {}]
  %s4 = sld [smem:[#allocation0]]
  $region22: #{image_captioning_lstm_forward.1} parent=0
    _
  %s6 = ssub.s32 1, %s4
  %s7 = scalar_select 0, %s6, %s4
  // Predicated region
  $region2: #{image_captioning_lstm_forward.1} parent=0 // pred_check
    _
  $region3: #{image_captioning_lstm_forward.1} parent=0 // pred_check_branch
    %9 = sbr.rel (0) target = $region5
  $region4: #{image_captioning_lstm_forward.1} parent=0 // pred_region
    _
  $region5: #{image_captioning_lstm_forward.1} parent=0 // pred_fallthru
    _
  // Predicated region
  $region6: #{image_captioning_lstm_forward.1} parent=0 // pred_check
    _
  $region7: #{image_captioning_lstm_forward.1} parent=0 // pred_check_branch
    %11 = sbr.rel (0) target = $region9
  $region8: #{image_captioning_lstm_forward.1} parent=0 // pred_region
    _
  $region9: #{image_captioning_lstm_forward.1} parent=0 // pred_fallthru
    _
  // Predicated region
  $region10: #{image_captioning_lstm_forward.1} parent=0 // pred_check
    _
  $region11: #{image_captioning_lstm_forward.1} parent=0 // pred_check_branch
    %13 = sbr.rel (0) target = $region13
  $region12: #{image_captioning_lstm_forward.1} parent=0 // pred_region
    _
  $region13: #{image_captioning_lstm_forward.1} parent=0 // pred_fallthru
    _
  %v14 = vld [vmem:[%s2 + $0x8] sm:$0xff]
  %v15 = vld [vmem:[%s0] sm:$0xff]
  %v16 = vld [vmem:[%s0 + $0x8] sm:$0xff]
  %v17 = vld [vmem:[%s0 + $0x10] sm:$0xff]
  %v18 = vld [vmem:[%s0 + $0x18] sm:$0xff]
  %v19 = vld [vmem:[%s0 + $0x20] sm:$0xff]
  %v20 = vld [vmem:[%s0 + $0x28] sm:$0xff]
  %v21 = vld [vmem:[%s0 + $0x30] sm:$0xff]
  %v22 = vld [vmem:[%s0 + $0x38] sm:$0xff]
  %v23 = vld [vmem:[%s0 + $0x40] sm:$0xff]
  %v24 = vld [vmem:[%s0 + $0x48] sm:$0xff]
  %v25 = vld [vmem:[%s0 + $0x50] sm:$0xff]
  %v26 = vld [vmem:[%s0 + $0x58] sm:$0xff]
  %v27 = vld [vmem:[%s0 + $0x60] sm:$0xff]
  %v28 = vld [vmem:[%s0 + $0x68] sm:$0xff]
  %v29 = vld [vmem:[%s0 + $0x70] sm:$0xff]
  %v30 = vld [vmem:[%s0 + $0x78] sm:$0xff]
  %v31 = vld [vmem:[%s0 + $0x80] sm:$0xff]
  %v32 = vld [vmem:[%s0 + $0x88] sm:$0xff]
  %v33 = vld [vmem:[%s0 + $0x90] sm:$0xff]
  %v34 = vld [vmem:[%s0 + $0x98] sm:$0xff]
  %v35 = vld [vmem:[%s0 + $0xa0] sm:$0xff]
  %v36 = vld [vmem:[%s0 + $0xa8] sm:$0xff]
  %v37 = vld [vmem:[%s0 + $0xb0] sm:$0xff]
  %v38 = vld [vmem:[%s0 + $0xb8] sm:$0xff]
  %v39 = vld [vmem:[%s0 + $0xc0] sm:$0xff]
  %v40 = vld [vmem:[%s0 + $0xc8] sm:$0xff]
  %v41 = vld [vmem:[%s0 + $0xd0] sm:$0xff]
  %v42 = vld [vmem:[%s0 + $0xd8] sm:$0xff]
  %v43 = vld [vmem:[%s0 + $0xe0] sm:$0xff]
  %v44 = vld [vmem:[%s0 + $0xe8] sm:$0xff]
  %v45 = vld [vmem:[%s0 + $0xf0] sm:$0xff]
  %v46 = vld [vmem:[%s0 + $0xf8] sm:$0xff]
  %v47 = vld [vmem:[%s0 + $0x100] sm:$0xff]
  %v48 = vld [vmem:[%s0 + $0x108] sm:$0xff]
  %v49 = vld [vmem:[%s0 + $0x110] sm:$0xff]
  %v50 = vld [vmem:[%s0 + $0x118] sm:$0xff]
  %v51 = vld [vmem:[%s0 + $0x120] sm:$0xff]
  %v52 = vld [vmem:[%s0 + $0x128] sm:$0xff]
  %v53 = vld [vmem:[%s0 + $0x130] sm:$0xff]
  %v54 = vld [vmem:[%s0 + $0x138] sm:$0xff]
  %v55 = vld [vmem:[%s0 + $0x140] sm:$0xff]
  %v56 = vld [vmem:[%s0 + $0x148] sm:$0xff]
  %v57 = vld [vmem:[%s0 + $0x150] sm:$0xff]
  %v58 = vld [vmem:[%s0 + $0x158] sm:$0xff]
  %v59 = vld [vmem:[%s0 + $0x160] sm:$0xff]
  %v60 = vld [vmem:[%s0 + $0x168] sm:$0xff]
  %v61 = vld [vmem:[%s0 + $0x170] sm:$0xff]
  %v62 = vld [vmem:[%s0 + $0x178] sm:$0xff]
  %v63 = vld [vmem:[%s0 + $0x180] sm:$0xff]
  %v64 = vld [vmem:[%s0 + $0x188] sm:$0xff]
  %v65 = vld [vmem:[%s0 + $0x190] sm:$0xff]
  %v66 = vld [vmem:[%s0 + $0x198] sm:$0xff]
  %v67 = vld [vmem:[%s0 + $0x1a0] sm:$0xff]
  %v68 = vld [vmem:[%s0 + $0x1a8] sm:$0xff]
  %v69 = vld [vmem:[%s0 + $0x1b0] sm:$0xff]
  %v70 = vld [vmem:[%s0 + $0x1b8] sm:$0xff]
  %v71 = vld [vmem:[%s0 + $0x1c0] sm:$0xff]
  %v72 = vld [vmem:[%s0 + $0x1c8] sm:$0xff]
  %v73 = vld [vmem:[%s0 + $0x1d0] sm:$0xff]
  %v74 = vld [vmem:[%s0 + $0x1d8] sm:$0xff]
  %v75 = vld [vmem:[%s0 + $0x1e0] sm:$0xff]
  %v76 = vld [vmem:[%s0 + $0x1e8] sm:$0xff]
  %v77 = vld [vmem:[%s0 + $0x1f0] sm:$0xff]
  %v78 = vld [vmem:[%s0 + $0x1f8] sm:$0xff]
  %v79 = vld [vmem:[%s2] sm:$0xff]
  %v80 = vperm.slane %v14, 0
  %vm81 = vcmask 64512
  %v83 = vsel %vm81, %v15, 0
  %v86 = vsel %vm81, %v16, 0
  %v89 = vsel %vm81, %v17, 0
  %v92 = vsel %vm81, %v18, 0
  %v95 = vsel %vm81, %v19, 0
  %v98 = vsel %vm81, %v20, 0
  %v101 = vsel %vm81, %v21, 0
  %v104 = vsel %vm81, %v22, 0
  %v107 = vsel %vm81, %v23, 0
  %v110 = vsel %vm81, %v24, 0
  %v113 = vsel %vm81, %v25, 0
  %v116 = vsel %vm81, %v26, 0
  %v119 = vsel %vm81, %v27, 0
  %v122 = vsel %vm81, %v28, 0
  %v125 = vsel %vm81, %v29, 0
  %v128 = vsel %vm81, %v30, 0
  %v131 = vsel %vm81, %v31, 0
  %v134 = vsel %vm81, %v32, 0
  %v137 = vsel %vm81, %v33, 0
  %v140 = vsel %vm81, %v34, 0
  %v143 = vsel %vm81, %v35, 0
  %v146 = vsel %vm81, %v36, 0
  %v149 = vsel %vm81, %v37, 0
  %v152 = vsel %vm81, %v38, 0
  %v155 = vsel %vm81, %v39, 0
  %v158 = vsel %vm81, %v40, 0
  %v161 = vsel %vm81, %v41, 0
  %v164 = vsel %vm81, %v42, 0
  %v167 = vsel %vm81, %v43, 0
  %v170 = vsel %vm81, %v44, 0
  %v173 = vsel %vm81, %v45, 0
  %v176 = vsel %vm81, %v46, 0
  %v179 = vsel %vm81, %v47, 0
  %v182 = vsel %vm81, %v48, 0
  %v185 = vsel %vm81, %v49, 0
  %v188 = vsel %vm81, %v50, 0
  %v191 = vsel %vm81, %v51, 0
  %v194 = vsel %vm81, %v52, 0
  %v197 = vsel %vm81, %v53, 0
  %v200 = vsel %vm81, %v54, 0
  %v203 = vsel %vm81, %v55, 0
  %v206 = vsel %vm81, %v56, 0
  %v209 = vsel %vm81, %v57, 0
  %v212 = vsel %vm81, %v58, 0
  %v215 = vsel %vm81, %v59, 0
  %v218 = vsel %vm81, %v60, 0
  %v221 = vsel %vm81, %v61, 0
  %v224 = vsel %vm81, %v62, 0
  %v227 = vsel %vm81, %v63, 0
  %v230 = vsel %vm81, %v64, 0
  %v233 = vsel %vm81, %v65, 0
  %v236 = vsel %vm81, %v66, 0
  %v239 = vsel %vm81, %v67, 0
  %v242 = vsel %vm81, %v68, 0
  %v245 = vsel %vm81, %v69, 0
  %v248 = vsel %vm81, %v70, 0
  %v251 = vsel %vm81, %v71, 0
  %v254 = vsel %vm81, %v72, 0
  %v257 = vsel %vm81, %v73, 0
  %v260 = vsel %vm81, %v74, 0
  %v263 = vsel %vm81, %v75, 0
  %v266 = vsel %vm81, %v76, 0
  %v269 = vsel %vm81, %v77, 0
  %v272 = vsel %vm81, %v78, 0
  %274 = vmatpush.msra.mxu0 0.0
  %275 = vmatpush.msra.mxu0 0.0
  %276 = vmatpush.msra.mxu0 0.0
  %277 = vmatpush.msra.mxu0 0.0
  %278 = vmatpush.msra.mxu0 0.0
  %279 = vmatpush.msra.mxu0 0.0
  %280 = vmatpush.msra.mxu0 0.0
  %281 = vmatpush.msra.mxu0 0.0
  %282 = vmatpush.msra.mxu0 0.0
  %283 = vmatpush.msra.mxu0 0.0
  %284 = vmatpush.msra.mxu0 0.0
  %285 = vmatpush.msra.mxu0 0.0
  %286 = vmatpush.msra.mxu0 0.0
  %287 = vmatpush.msra.mxu0 0.0
  %288 = vmatpush.msra.mxu0 0.0
  %289 = vmatpush.msra.mxu0 %v79
  %290 = vmatmul.f32.gmra.mxu0 %v83
  %v291 = vpop.f32.mrf.mxu0
  %v292 = vadd.f32 %v80, %v291
  %293 = vmatmul.f32.gmra.mxu0 %v86
  %v294 = vpop.f32.mrf.mxu0
  %v295 = vadd.f32 %v80, %v294
  %296 = vmatmul.f32.gmra.mxu0 %v89
  %v297 = vpop.f32.mrf.mxu0
  %v298 = vadd.f32 %v80, %v297
  %299 = vmatmul.f32.gmra.mxu0 %v92
  %v300 = vpop.f32.mrf.mxu0
  %v301 = vadd.f32 %v80, %v300
  %302 = vmatmul.f32.gmra.mxu0 %v95
  %v303 = vpop.f32.mrf.mxu0
  %v304 = vadd.f32 %v80, %v303
  %305 = vmatmul.f32.gmra.mxu0 %v98
  %v306 = vpop.f32.mrf.mxu0
  %v307 = vadd.f32 %v80, %v306
  %308 = vmatmul.f32.gmra.mxu0 %v101
  %v309 = vpop.f32.mrf.mxu0
  %v310 = vadd.f32 %v80, %v309
  %311 = vmatmul.f32.gmra.mxu0 %v104
  %v312 = vpop.f32.mrf.mxu0
  %v313 = vadd.f32 %v80, %v312
  %314 = vmatmul.f32.gmra.mxu0 %v107
  %v315 = vpop.f32.mrf.mxu0
  %v316 = vadd.f32 %v80, %v315
  %317 = vmatmul.f32.gmra.mxu0 %v110
  %v318 = vpop.f32.mrf.mxu0
  %v319 = vadd.f32 %v80, %v318
  %320 = vmatmul.f32.gmra.mxu0 %v113
  %v321 = vpop.f32.mrf.mxu0
  %v322 = vadd.f32 %v80, %v321
  %323 = vmatmul.f32.gmra.mxu0 %v116
  %v324 = vpop.f32.mrf.mxu0
  %v325 = vadd.f32 %v80, %v324
  %326 = vmatmul.f32.gmra.mxu0 %v119
  %v327 = vpop.f32.mrf.mxu0
  %v328 = vadd.f32 %v80, %v327
  %329 = vmatmul.f32.gmra.mxu0 %v122
  %v330 = vpop.f32.mrf.mxu0
  %v331 = vadd.f32 %v80, %v330
  %332 = vmatmul.f32.gmra.mxu0 %v125
  %v333 = vpop.f32.mrf.mxu0
  %v334 = vadd.f32 %v80, %v333
  %335 = vmatmul.f32.gmra.mxu0 %v128
  %v336 = vpop.f32.mrf.mxu0
  %v337 = vadd.f32 %v80, %v336
  %338 = vmatmul.f32.gmra.mxu0 %v131
  %v339 = vpop.f32.mrf.mxu0
  %v340 = vadd.f32 %v80, %v339
  %341 = vmatmul.f32.gmra.mxu0 %v134
  %v342 = vpop.f32.mrf.mxu0
  %v343 = vadd.f32 %v80, %v342
  %344 = vmatmul.f32.gmra.mxu0 %v137
  %v345 = vpop.f32.mrf.mxu0
  %v346 = vadd.f32 %v80, %v345
  %347 = vmatmul.f32.gmra.mxu0 %v140
  %v348 = vpop.f32.mrf.mxu0
  %v349 = vadd.f32 %v80, %v348
  %350 = vmatmul.f32.gmra.mxu0 %v143
  %v351 = vpop.f32.mrf.mxu0
  %v352 = vadd.f32 %v80, %v351
  %353 = vmatmul.f32.gmra.mxu0 %v146
  %v354 = vpop.f32.mrf.mxu0
  %v355 = vadd.f32 %v80, %v354
  %356 = vmatmul.f32.gmra.mxu0 %v149
  %v357 = vpop.f32.mrf.mxu0
  %v358 = vadd.f32 %v80, %v357
  %359 = vmatmul.f32.gmra.mxu0 %v152
  %v360 = vpop.f32.mrf.mxu0
  %v361 = vadd.f32 %v80, %v360
  %362 = vmatmul.f32.gmra.mxu0 %v155
  %v363 = vpop.f32.mrf.mxu0
  %v364 = vadd.f32 %v80, %v363
  %365 = vmatmul.f32.gmra.mxu0 %v158
  %v366 = vpop.f32.mrf.mxu0
  %v367 = vadd.f32 %v80, %v366
  %368 = vmatmul.f32.gmra.mxu0 %v161
  %v369 = vpop.f32.mrf.mxu0
  %v370 = vadd.f32 %v80, %v369
  %371 = vmatmul.f32.gmra.mxu0 %v164
  %v372 = vpop.f32.mrf.mxu0
  %v373 = vadd.f32 %v80, %v372
  %374 = vmatmul.f32.gmra.mxu0 %v167
  %v375 = vpop.f32.mrf.mxu0
  %v376 = vadd.f32 %v80, %v375
  %377 = vmatmul.f32.gmra.mxu0 %v170
  %v378 = vpop.f32.mrf.mxu0
  %v379 = vadd.f32 %v80, %v378
  %380 = vmatmul.f32.gmra.mxu0 %v173
  %v381 = vpop.f32.mrf.mxu0
  %v382 = vadd.f32 %v80, %v381
  %383 = vmatmul.f32.gmra.mxu0 %v176
  %v384 = vpop.f32.mrf.mxu0
  %v385 = vadd.f32 %v80, %v384
  %386 = vmatmul.f32.gmra.mxu0 %v179
  %v387 = vpop.f32.mrf.mxu0
  %v388 = vadd.f32 %v80, %v387
  %389 = vmatmul.f32.gmra.mxu0 %v182
  %v390 = vpop.f32.mrf.mxu0
  %v391 = vadd.f32 %v80, %v390
  %392 = vmatmul.f32.gmra.mxu0 %v185
  %v393 = vpop.f32.mrf.mxu0
  %v394 = vadd.f32 %v80, %v393
  %395 = vmatmul.f32.gmra.mxu0 %v188
  %v396 = vpop.f32.mrf.mxu0
  %v397 = vadd.f32 %v80, %v396
  %398 = vmatmul.f32.gmra.mxu0 %v191
  %v399 = vpop.f32.mrf.mxu0
  %v400 = vadd.f32 %v80, %v399
  %401 = vmatmul.f32.gmra.mxu0 %v194
  %v402 = vpop.f32.mrf.mxu0
  %v403 = vadd.f32 %v80, %v402
  %404 = vmatmul.f32.gmra.mxu0 %v197
  %v405 = vpop.f32.mrf.mxu0
  %v406 = vadd.f32 %v80, %v405
  %407 = vmatmul.f32.gmra.mxu0 %v200
  %v408 = vpop.f32.mrf.mxu0
  %v409 = vadd.f32 %v80, %v408
  %410 = vmatmul.f32.gmra.mxu0 %v203
  %v411 = vpop.f32.mrf.mxu0
  %v412 = vadd.f32 %v80, %v411
  %413 = vmatmul.f32.gmra.mxu0 %v206
  %v414 = vpop.f32.mrf.mxu0
  %v415 = vadd.f32 %v80, %v414
  %416 = vmatmul.f32.gmra.mxu0 %v209
  %v417 = vpop.f32.mrf.mxu0
  %v418 = vadd.f32 %v80, %v417
  %419 = vmatmul.f32.gmra.mxu0 %v212
  %v420 = vpop.f32.mrf.mxu0
  %v421 = vadd.f32 %v80, %v420
  %422 = vmatmul.f32.gmra.mxu0 %v215
  %v423 = vpop.f32.mrf.mxu0
  %v424 = vadd.f32 %v80, %v423
  %425 = vmatmul.f32.gmra.mxu0 %v218
  %v426 = vpop.f32.mrf.mxu0
  %v427 = vadd.f32 %v80, %v426
  %428 = vmatmul.f32.gmra.mxu0 %v221
  %v429 = vpop.f32.mrf.mxu0
  %v430 = vadd.f32 %v80, %v429
  %431 = vmatmul.f32.gmra.mxu0 %v224
  %v432 = vpop.f32.mrf.mxu0
  %v433 = vadd.f32 %v80, %v432
  %434 = vmatmul.f32.gmra.mxu0 %v227
  %v435 = vpop.f32.mrf.mxu0
  %v436 = vadd.f32 %v80, %v435
  %437 = vmatmul.f32.gmra.mxu0 %v230
  %v438 = vpop.f32.mrf.mxu0
  %v439 = vadd.f32 %v80, %v438
  %440 = vmatmul.f32.gmra.mxu0 %v233
  %v441 = vpop.f32.mrf.mxu0
  %v442 = vadd.f32 %v80, %v441
  %443 = vmatmul.f32.gmra.mxu0 %v236
  %v444 = vpop.f32.mrf.mxu0
  %v445 = vadd.f32 %v80, %v444
  %446 = vmatmul.f32.gmra.mxu0 %v239
  %v447 = vpop.f32.mrf.mxu0
  %v448 = vadd.f32 %v80, %v447
  %449 = vmatmul.f32.gmra.mxu0 %v242
  %v450 = vpop.f32.mrf.mxu0
  %v451 = vadd.f32 %v80, %v450
  %452 = vmatmul.f32.gmra.mxu0 %v245
  %v453 = vpop.f32.mrf.mxu0
  %v454 = vadd.f32 %v80, %v453
  %455 = vmatmul.f32.gmra.mxu0 %v248
  %v456 = vpop.f32.mrf.mxu0
  %v457 = vadd.f32 %v80, %v456
  %458 = vmatmul.f32.gmra.mxu0 %v251
  %v459 = vpop.f32.mrf.mxu0
  %v460 = vadd.f32 %v80, %v459
  %461 = vmatmul.f32.gmra.mxu0 %v254
  %v462 = vpop.f32.mrf.mxu0
  %v463 = vadd.f32 %v80, %v462
  %464 = vmatmul.f32.gmra.mxu0 %v257
  %v465 = vpop.f32.mrf.mxu0
  %v466 = vadd.f32 %v80, %v465
  %467 = vmatmul.f32.gmra.mxu0 %v260
  %v468 = vpop.f32.mrf.mxu0
  %v469 = vadd.f32 %v80, %v468
  %470 = vmatmul.f32.gmra.mxu0 %v263
  %v471 = vpop.f32.mrf.mxu0
  %v472 = vadd.f32 %v80, %v471
  %473 = vmatmul.f32.gmra.mxu0 %v266
  %v474 = vpop.f32.mrf.mxu0
  %v475 = vadd.f32 %v80, %v474
  %476 = vmatmul.f32.gmra.mxu0 %v269
  %v477 = vpop.f32.mrf.mxu0
  %v478 = vadd.f32 %v80, %v477
  %479 = vmatmul.f32.gmra.mxu0 %v272
  %v480 = vpop.f32.mrf.mxu0
  %v481 = vadd.f32 %v80, %v480
  %482 = vdwg.mxu0
  %v483 = vmax.f32 %v292, 0.0
  %v484 = vmax.f32 %v295, 0.0
  %v485 = vmax.f32 %v298, 0.0
  %v486 = vmax.f32 %v301, 0.0
  %v487 = vmax.f32 %v304, 0.0
  %v488 = vmax.f32 %v307, 0.0
  %v489 = vmax.f32 %v310, 0.0
  %v490 = vmax.f32 %v313, 0.0
  %v491 = vmax.f32 %v316, 0.0
  %v492 = vmax.f32 %v319, 0.0
  %v493 = vmax.f32 %v322, 0.0
  %v494 = vmax.f32 %v325, 0.0
  %v495 = vmax.f32 %v328, 0.0
  %v496 = vmax.f32 %v331, 0.0
  %v497 = vmax.f32 %v334, 0.0
  %v498 = vmax.f32 %v337, 0.0
  %v499 = vmax.f32 %v340, 0.0
  %v500 = vmax.f32 %v343, 0.0
  %v501 = vmax.f32 %v346, 0.0
  %v502 = vmax.f32 %v349, 0.0
  %v503 = vmax.f32 %v352, 0.0
  %v504 = vmax.f32 %v355, 0.0
  %v505 = vmax.f32 %v358, 0.0
  %v506 = vmax.f32 %v361, 0.0
  %v507 = vmax.f32 %v364, 0.0
  %v508 = vmax.f32 %v367, 0.0
  %v509 = vmax.f32 %v370, 0.0
  %v510 = vmax.f32 %v373, 0.0
  %v511 = vmax.f32 %v376, 0.0
  %v512 = vmax.f32 %v379, 0.0
  %v513 = vmax.f32 %v382, 0.0
  %v514 = vmax.f32 %v385, 0.0
  %v515 = vmax.f32 %v388, 0.0
  %v516 = vmax.f32 %v391, 0.0
  %v517 = vmax.f32 %v394, 0.0
  %v518 = vmax.f32 %v397, 0.0
  %v519 = vmax.f32 %v400, 0.0
  %v520 = vmax.f32 %v403, 0.0
  %v521 = vmax.f32 %v406, 0.0
  %v522 = vmax.f32 %v409, 0.0
  %v523 = vmax.f32 %v412, 0.0
  %v524 = vmax.f32 %v415, 0.0
  %v525 = vmax.f32 %v418, 0.0
  %v526 = vmax.f32 %v421, 0.0
  %v527 = vmax.f32 %v424, 0.0
  %v528 = vmax.f32 %v427, 0.0
  %v529 = vmax.f32 %v430, 0.0
  %v530 = vmax.f32 %v433, 0.0
  %v531 = vmax.f32 %v436, 0.0
  %v532 = vmax.f32 %v439, 0.0
  %v533 = vmax.f32 %v442, 0.0
  %v534 = vmax.f32 %v445, 0.0
  %v535 = vmax.f32 %v448, 0.0
  %v536 = vmax.f32 %v451, 0.0
  %v537 = vmax.f32 %v454, 0.0
  %v538 = vmax.f32 %v457, 0.0
  %v539 = vmax.f32 %v460, 0.0
  %v540 = vmax.f32 %v463, 0.0
  %v541 = vmax.f32 %v466, 0.0
  %v542 = vmax.f32 %v469, 0.0
  %v543 = vmax.f32 %v472, 0.0
  %v544 = vmax.f32 %v475, 0.0
  %v545 = vmax.f32 %v478, 0.0
  %v546 = vmax.f32 %v481, 0.0
  %v547 = vlaneseq
  %v548 = vshrl.u32 %v547, 7
  %v549 = vlaneseq
  %v550 = vand.u32 %v549, 127
  %v551 = vadd.s32 %v550, 128
  %v552 = vadd.s32 %v550, 256
  %v553 = vadd.s32 %v550, 384
  %v554 = vmul.u32 %v548, 256
  %vm555 = vcmp.ge.s32.totalorder %v550, %v554
  %vm556 = vcmp.ge.s32.totalorder %v551, %v554
  %vm557 = vcmp.ge.s32.totalorder %v552, %v554
  %vm558 = vcmp.ge.s32.totalorder %v553, %v554
  %v559 = vadd.s32 %v554, 256
  %vm560 = vcmp.lt.s32.totalorder %v550, %v559
  %vm561 = vcmp.lt.s32.totalorder %v551, %v559
  %vm562 = vcmp.lt.s32.totalorder %v552, %v559
  %vm563 = vcmp.lt.s32.totalorder %v553, %v559
  %vm564 = vmand %vm555, %vm560
  %vm565 = vmand %vm556, %vm561
  %vm566 = vmand %vm557, %vm562
  %vm567 = vmand %vm558, %vm563
  %v568 = vsel %vm564, 0.00390625, 0.0
  %v569 = vsel %vm565, 0.00390625, 0.0
  %v570 = vsel %vm566, 0.00390625, 0.0
  %v571 = vsel %vm567, 0.00390625, 0.0
  %572 = vmatpush.msra.mxu0 %v498
  %573 = vmatpush.msra.mxu0 %v497
  %574 = vmatpush.msra.mxu0 %v496
  %575 = vmatpush.msra.mxu0 %v495
  %576 = vmatpush.msra.mxu0 %v494
  %577 = vmatpush.msra.mxu0 %v493
  %578 = vmatpush.msra.mxu0 %v492
  %579 = vmatpush.msra.mxu0 %v491
  %580 = vmatpush.msra.mxu0 %v490
  %581 = vmatpush.msra.mxu0 %v489
  %582 = vmatpush.msra.mxu0 %v488
  %583 = vmatpush.msra.mxu0 %v487
  %584 = vmatpush.msra.mxu0 %v486
  %585 = vmatpush.msra.mxu0 %v485
  %586 = vmatpush.msra.mxu0 %v484
  %587 = vmatpush.msra.mxu0 %v483
  %588 = vmatmul.f32.gmra.mxu0 %v568
  %v589 = vpop.f32.mrf.mxu0
  %v590 = vadd.f32 0.0, %v589
  %591 = vdwg.mxu0
  %592 = vmatpush.msra.mxu0 %v514
  %593 = vmatpush.msra.mxu0 %v513
  %594 = vmatpush.msra.mxu0 %v512
  %595 = vmatpush.msra.mxu0 %v511
  %596 = vmatpush.msra.mxu0 %v510
  %597 = vmatpush.msra.mxu0 %v509
  %598 = vmatpush.msra.mxu0 %v508
  %599 = vmatpush.msra.mxu0 %v507
  %600 = vmatpush.msra.mxu0 %v506
  %601 = vmatpush.msra.mxu0 %v505
  %602 = vmatpush.msra.mxu0 %v504
  %603 = vmatpush.msra.mxu0 %v503
  %604 = vmatpush.msra.mxu0 %v502
  %605 = vmatpush.msra.mxu0 %v501
  %606 = vmatpush.msra.mxu0 %v500
  %607 = vmatpush.msra.mxu0 %v499
  %608 = vmatmul.f32.gmra.mxu0 %v569
  %v609 = vpop.f32.mrf.mxu0
  %v610 = vadd.f32 %v590, %v609
  %611 = vdwg.mxu0
  %612 = vmatpush.msra.mxu0 %v530
  %613 = vmatpush.msra.mxu0 %v529
  %614 = vmatpush.msra.mxu0 %v528
  %615 = vmatpush.msra.mxu0 %v527
  %616 = vmatpush.msra.mxu0 %v526
  %617 = vmatpush.msra.mxu0 %v525
  %618 = vmatpush.msra.mxu0 %v524
  %619 = vmatpush.msra.mxu0 %v523
  %620 = vmatpush.msra.mxu0 %v522
  %621 = vmatpush.msra.mxu0 %v521
  %622 = vmatpush.msra.mxu0 %v520
  %623 = vmatpush.msra.mxu0 %v519
  %624 = vmatpush.msra.mxu0 %v518
  %625 = vmatpush.msra.mxu0 %v517
  %626 = vmatpush.msra.mxu0 %v516
  %627 = vmatpush.msra.mxu0 %v515
  %628 = vmatmul.f32.gmra.mxu0 %v570
  %v629 = vpop.f32.mrf.mxu0
  %v630 = vadd.f32 %v610, %v629
  %631 = vdwg.mxu0
  %632 = vmatpush.msra.mxu0 %v546
  %633 = vmatpush.msra.mxu0 %v545
  %634 = vmatpush.msra.mxu0 %v544
  %635 = vmatpush.msra.mxu0 %v543
  %636 = vmatpush.msra.mxu0 %v542
  %637 = vmatpush.msra.mxu0 %v541
  %638 = vmatpush.msra.mxu0 %v540
  %639 = vmatpush.msra.mxu0 %v539
  %640 = vmatpush.msra.mxu0 %v538
  %641 = vmatpush.msra.mxu0 %v537
  %642 = vmatpush.msra.mxu0 %v536
  %643 = vmatpush.msra.mxu0 %v535
  %644 = vmatpush.msra.mxu0 %v534
  %645 = vmatpush.msra.mxu0 %v533
  %646 = vmatpush.msra.mxu0 %v532
  %647 = vmatpush.msra.mxu0 %v531
  %648 = vmatmul.f32.gmra.mxu0 %v571
  %v649 = vpop.f32.mrf.mxu0
  %v650 = vadd.f32 %v630, %v649
  %651 = vdwg.mxu0
  %v652 = vld [vmem:[%s2 + $0x10] sm:$0xff]
  %v653 = vld [vmem:[%s2 + $0x18] sm:$0xff]
  %v654 = vld [vmem:[%s2 + $0x20] sm:$0xff]
  %v655 = vld [vmem:[%s2 + $0x28] sm:$0xff]
  %v656 = vld [vmem:[%s2 + $0x30] sm:$0xff]
  %v657 = vld [vmem:[%s2 + $0x38] sm:$0xff]
  %v658 = vld [vmem:[%s2 + $0x40] sm:$0xff]
  %v659 = vld [vmem:[%s2 + $0x48] sm:$0xff]
  %v660 = vld [vmem:[%s2 + $0x50] sm:$0xff]
  %v661 = vld [vmem:[%s2 + $0x58] sm:$0xff]
  %v662 = vld [vmem:[%s2 + $0x60] sm:$0xff]
  %v663 = vld [vmem:[%s2 + $0x68] sm:$0xff]
  %v664 = vld [vmem:[%s2 + $0x70] sm:$0xff]
  %v665 = vld [vmem:[%s2 + $0x78] sm:$0xff]
  %v666 = vld [vmem:[%s2 + $0x80] sm:$0xff]
  %v667 = vld [vmem:[%s2 + $0x88] sm:$0xff]
  %668 = vmatpush.msra.mxu0 %v667
  %669 = vmatpush.msra.mxu0 %v666
  %670 = vmatpush.msra.mxu0 %v665
  %671 = vmatpush.msra.mxu0 %v664
  %672 = vmatpush.msra.mxu0 %v663
  %673 = vmatpush.msra.mxu0 %v662
  %674 = vmatpush.msra.mxu0 %v661
  %675 = vmatpush.msra.mxu0 %v660
  %676 = vmatpush.msra.mxu0 %v659
  %677 = vmatpush.msra.mxu0 %v658
  %678 = vmatpush.msra.mxu0 %v657
  %679 = vmatpush.msra.mxu0 %v656
  %680 = vmatpush.msra.mxu0 %v655
  %681 = vmatpush.msra.mxu0 %v654
  %682 = vmatpush.msra.mxu0 %v653
  %683 = vmatpush.msra.mxu0 %v652
  %684 = vmatmul.f32.gmra.mxu0 %v650
  %v685 = vpop.f32.mrf.mxu0
  %v686 = vadd.f32 0.0, %v685
  %687 = vdwg.mxu0
  %vm688 = vcmask 1041408
  %v689 = vsel %vm688, %v686, 0.0
  %v690 = vrot.slane %v689, 4
  %v691 = vadd.f32 %v689, %v690
  %v692 = vrot.slane %v691, 2
  %v693 = vadd.f32 %v691, %v692
  %v694 = vrot.slane %v693, 1
  %v695 = vadd.f32 %v693, %v694
  %v696 = vrcp.pop 2.0
  %v697 = vmul.f32 2.0, %v696
  %v698 = vsub.f32 1.0, %v697
  %v699 = vmul.f32 %v696, %v698
  %v700 = vadd.f32 %v696, %v699
  %vm701 = vweird.f32 %v696
  %v702 = vsel %vm701, %v696, %v700
  %v703 = vmul.f32 %v695, %v702
  %v704 = vsub.f32 %v686, %v703
  %v705 = vmul.f32 %v704, %v704
  %v706 = vsel %vm688, %v705, 0.0
  %v707 = vrot.slane %v706, 4
  %v708 = vadd.f32 %v706, %v707
  %v709 = vrot.slane %v708, 2
  %v710 = vadd.f32 %v708, %v709
  %v711 = vrot.slane %v710, 1
  %v712 = vadd.f32 %v710, %v711
  %v713 = vmul.f32 %v712, %v702
  %v714 = vadd.f32 %v713, 1e-05
  %v715 = vrsqrt.pop %v714
  %v716 = vmul.f32 %v715, %v714
  %v717 = vmul.f32 %v716, %v715
  %v718 = vmul.f32 0.5, %v717
  %v719 = vsub.f32 1.5, %v718
  %v720 = vmul.f32 %v715, %v719
  %vm721 = vweird.f32 %v714
  %vm722 = vweird.f32 %v715
  %vm723 = vmor %vm721, %vm722
  %v724 = vsel %vm723, %v715, %v720
  %v725 = vmul.f32 %v704, %v724
  %v726 = vld [vmem:[%s2 + $0x90] sm:$0xff]
  %v727 = vld [vmem:[%s2 + $0x98] sm:$0xff]
  %v728 = vld [vmem:[%s2 + $0xa0] sm:$0xff]
  %v729 = vld [vmem:[%s2 + $0xa8] sm:$0xff]
  %v730 = vld [vmem:[%s2 + $0xb0] sm:$0xff]
  %v731 = vld [vmem:[%s2 + $0xb8] sm:$0xff]
  %v732 = vld [vmem:[%s2 + $0xc0] sm:$0xff]
  %v733 = vld [vmem:[%s2 + $0xc8] sm:$0xff]
  %v734 = vld [vmem:[%s2 + $0xd0] sm:$0xff]
  %v735 = vld [vmem:[%s2 + $0xd8] sm:$0xff]
  %v736 = vld [vmem:[%s2 + $0xe0] sm:$0xff]
  %v737 = vld [vmem:[%s2 + $0xe8] sm:$0xff]
  %v738 = vld [vmem:[%s2 + $0xf0] sm:$0xff]
  %v739 = vld [vmem:[%s2 + $0xf8] sm:$0xff]
  %v740 = vld [vmem:[%s2 + $0x100] sm:$0xff]
  %v741 = vld [vmem:[%s2 + $0x108] sm:$0xff]
  %v742 = vperm.slane %v14, 1
  %743 = vmatpush.msra.mxu0 %v741
  %744 = vmatpush.msra.mxu0 %v740
  %745 = vmatpush.msra.mxu0 %v739
  %746 = vmatpush.msra.mxu0 %v738
  %747 = vmatpush.msra.mxu0 %v737
  %748 = vmatpush.msra.mxu0 %v736
  %749 = vmatpush.msra.mxu0 %v735
  %750 = vmatpush.msra.mxu0 %v734
  %751 = vmatpush.msra.mxu0 %v733
  %752 = vmatpush.msra.mxu0 %v732
  %753 = vmatpush.msra.mxu0 %v731
  %754 = vmatpush.msra.mxu0 %v730
  %755 = vmatpush.msra.mxu0 %v729
  %756 = vmatpush.msra.mxu0 %v728
  %757 = vmatpush.msra.mxu0 %v727
  %758 = vmatpush.msra.mxu0 %v726
  %759 = vmatmul.f32.gmra.mxu0 %v725
  %v760 = vpop.f32.mrf.mxu0
  %v761 = vadd.f32 %v742, %v760
  %762 = vdwg.mxu0
  %v763 = vld [vmem:[%s1] sm:$0xff]
  %v764 = vld [vmem:[%s1 + $0x8] sm:$0xff]
  %v765 = vld [vmem:[%s1 + $0x10] sm:$0xff]
  %v766 = vld [vmem:[%s1 + $0x18] sm:$0xff]
  %v767 = vld [vmem:[%s1 + $0x20] sm:$0xff]
  %v768 = vld [vmem:[%s1 + $0x28] sm:$0xff]
  %v769 = vld [vmem:[%s1 + $0x30] sm:$0xff]
  %v770 = vld [vmem:[%s1 + $0x38] sm:$0xff]
  %771 = vset.pattern.permute.xlu0 0
  %772 = vperm.xlu0 %771, %v763
  %v773 = vpop.permute.xlu0 %772
  %774 = vset.pattern.permute.xlu0 0
  %775 = vperm.xlu0 %774, %v764
  %v776 = vpop.permute.xlu0 %775
  %777 = vset.pattern.permute.xlu0 0
  %778 = vperm.xlu0 %777, %v765
  %v779 = vpop.permute.xlu0 %778
  %780 = vset.pattern.permute.xlu0 0
  %781 = vperm.xlu0 %780, %v766
  %v782 = vpop.permute.xlu0 %781
  %783 = vset.pattern.permute.xlu0 0
  %784 = vperm.xlu0 %783, %v767
  %v785 = vpop.permute.xlu0 %784
  %786 = vset.pattern.permute.xlu0 0
  %787 = vperm.xlu0 %786, %v768
  %v788 = vpop.permute.xlu0 %787
  %789 = vset.pattern.permute.xlu0 0
  %790 = vperm.xlu0 %789, %v769
  %v791 = vpop.permute.xlu0 %790
  %792 = vset.pattern.permute.xlu0 0
  %793 = vperm.xlu0 %792, %v770
  %v794 = vpop.permute.xlu0 %793
  %vm795 = vcmp.eq.s32.totalorder %v550, %v773
  %vm796 = vcmp.eq.s32.totalorder %v550, %v776
  %vm797 = vcmp.eq.s32.totalorder %v550, %v779
  %vm798 = vcmp.eq.s32.totalorder %v550, %v782
  %vm799 = vcmp.eq.s32.totalorder %v550, %v785
  %vm800 = vcmp.eq.s32.totalorder %v550, %v788
  %vm801 = vcmp.eq.s32.totalorder %v550, %v791
  %vm802 = vcmp.eq.s32.totalorder %v550, %v794
  %v803 = vsel %vm795, 1, 0
  %v804 = vsel %vm796, 1, 0
  %v805 = vsel %vm797, 1, 0
  %v806 = vsel %vm798, 1, 0
  %v807 = vsel %vm799, 1, 0
  %v808 = vsel %vm800, 1, 0
  %v809 = vsel %vm801, 1, 0
  %v810 = vsel %vm802, 1, 0
  %v811 = vcvt.s32.f32 %v803
  %v812 = vcvt.s32.f32 %v804
  %v813 = vcvt.s32.f32 %v805
  %v814 = vcvt.s32.f32 %v806
  %v815 = vcvt.s32.f32 %v807
  %v816 = vcvt.s32.f32 %v808
  %v817 = vcvt.s32.f32 %v809
  %v818 = vcvt.s32.f32 %v810
  %v819 = vld [vmem:[%s2 + $0x110] sm:$0xff]
  %v820 = vld [vmem:[%s2 + $0x118] sm:$0xff]
  %v821 = vld [vmem:[%s2 + $0x120] sm:$0xff]
  %v822 = vld [vmem:[%s2 + $0x128] sm:$0xff]
  %v823 = vld [vmem:[%s2 + $0x130] sm:$0xff]
  %v824 = vld [vmem:[%s2 + $0x138] sm:$0xff]
  %v825 = vld [vmem:[%s2 + $0x140] sm:$0xff]
  %v826 = vld [vmem:[%s2 + $0x148] sm:$0xff]
  %vm827 = vcmask 523264
  %v829 = vsel %vm827, %v811, 0
  %v832 = vsel %vm827, %v812, 0
  %v835 = vsel %vm827, %v813, 0
  %v838 = vsel %vm827, %v814, 0
  %v841 = vsel %vm827, %v815, 0
  %v844 = vsel %vm827, %v816, 0
  %v847 = vsel %vm827, %v817, 0
  %v850 = vsel %vm827, %v818, 0
  %852 = vmatpush.msra.mxu0 0.0
  %853 = vmatpush.msra.mxu0 0.0
  %854 = vmatpush.msra.mxu0 0.0
  %855 = vmatpush.msra.mxu0 0.0
  %856 = vmatpush.msra.mxu0 0.0
  %857 = vmatpush.msra.mxu0 0.0
  %858 = vmatpush.msra.mxu0 0.0
  %859 = vmatpush.msra.mxu0 0.0
  %860 = vmatpush.msra.mxu0 %v826
  %861 = vmatpush.msra.mxu0 %v825
  %862 = vmatpush.msra.mxu0 %v824
  %863 = vmatpush.msra.mxu0 %v823
  %864 = vmatpush.msra.mxu0 %v822
  %865 = vmatpush.msra.mxu0 %v821
  %866 = vmatpush.msra.mxu0 %v820
  %867 = vmatpush.msra.mxu0 %v819
  %868 = vmatmul.f32.gmra.mxu0 %v829
  %v869 = vpop.f32.mrf.mxu0
  %v870 = vadd.f32 0.0, %v869
  %871 = vmatmul.f32.gmra.mxu0 %v832
  %v872 = vpop.f32.mrf.mxu0
  %v873 = vadd.f32 0.0, %v872
  %874 = vmatmul.f32.gmra.mxu0 %v835
  %v875 = vpop.f32.mrf.mxu0
  %v876 = vadd.f32 0.0, %v875
  %877 = vmatmul.f32.gmra.mxu0 %v838
  %v878 = vpop.f32.mrf.mxu0
  %v879 = vadd.f32 0.0, %v878
  %880 = vmatmul.f32.gmra.mxu0 %v841
  %v881 = vpop.f32.mrf.mxu0
  %v882 = vadd.f32 0.0, %v881
  %883 = vmatmul.f32.gmra.mxu0 %v844
  %v884 = vpop.f32.mrf.mxu0
  %v885 = vadd.f32 0.0, %v884
  %886 = vmatmul.f32.gmra.mxu0 %v847
  %v887 = vpop.f32.mrf.mxu0
  %v888 = vadd.f32 0.0, %v887
  %889 = vmatmul.f32.gmra.mxu0 %v850
  %v890 = vpop.f32.mrf.mxu0
  %v891 = vadd.f32 0.0, %v890
  %892 = vdwg.mxu0
  %v893 = vld [vmem:[%s2 + $0x150] sm:$0xff]
  %v894 = vld [vmem:[%s2 + $0x158] sm:$0xff]
  %v895 = vld [vmem:[%s2 + $0x160] sm:$0xff]
  %v896 = vld [vmem:[%s2 + $0x168] sm:$0xff]
  %v897 = vld [vmem:[%s2 + $0x170] sm:$0xff]
  %v898 = vld [vmem:[%s2 + $0x178] sm:$0xff]
  %v899 = vld [vmem:[%s2 + $0x180] sm:$0xff]
  %v900 = vld [vmem:[%s2 + $0x188] sm:$0xff]
  %v901 = vld [vmem:[%s2 + $0x190] sm:$0xff]
  %v902 = vld [vmem:[%s2 + $0x198] sm:$0xff]
  %v903 = vld [vmem:[%s2 + $0x1a0] sm:$0xff]
  %v904 = vld [vmem:[%s2 + $0x1a8] sm:$0xff]
  %v905 = vld [vmem:[%s2 + $0x1b0] sm:$0xff]
  %v906 = vld [vmem:[%s2 + $0x1b8] sm:$0xff]
  %v907 = vld [vmem:[%s2 + $0x1c0] sm:$0xff]
  %v908 = vld [vmem:[%s2 + $0x1c8] sm:$0xff]
  %v909 = vxor.u32 %v761, 2147483648
  %v910 = vmul.f32 %v909, 1.442695
  %v911 = vpow.pop %v910
  %v912 = vadd.f32 %v911, 1.0
  %v913 = vrcp.pop %v912
  %v914 = vmul.f32 %v912, %v913
  %v915 = vsub.f32 1.0, %v914
  %v916 = vmul.f32 %v913, %v915
  %v917 = vadd.f32 %v913, %v916
  %vm918 = vweird.f32 %v912
  %vm919 = vweird.f32 %v913
  %vm920 = vmor %vm918, %vm919
  %v921 = vsel %vm920, %v913, %v917
  %v922 = vand.u32 2147483647, %v912
  %vm923 = vcmp.eq.f32.partialorder %v922, 8.507059e+37
  %v924 = vand.u32 %v912, 2147483648
  %v925 = vor.u32 1.1754944e-38, %v924
  %v926 = vsel %vm923, %v925, %v921
  %v927 = vmul.f32 1.0, %v926
  %v928 = vtanh.pop %v761
  %930 = vrot.lane.b32.xlu0 %v927, 96
  %v931 = vpop.permute.xlu0 %930
  %933 = vrot.lane.b32.xlu0 %v927, 64
  %v934 = vpop.permute.xlu0 %933
  %937 = vrot.lane.b32.xlu0 %v928, 32
  %v938 = vpop.permute.xlu0 %937
  %v940 = vmul.f32 %v931, 0.0
  %v941 = vmul.f32 %v927, %v938
  %v942 = vadd.f32 %v940, %v941
  %v943 = vtanh.pop %v942
  %v944 = vmul.f32 %v934, %v943
  %945 = vmatpush.msra.mxu0 %v908
  %946 = vmatpush.msra.mxu0 %v907
  %947 = vmatpush.msra.mxu0 %v906
  %948 = vmatpush.msra.mxu0 %v905
  %949 = vmatpush.msra.mxu0 %v904
  %950 = vmatpush.msra.mxu0 %v903
  %951 = vmatpush.msra.mxu0 %v902
  %952 = vmatpush.msra.mxu0 %v901
  %953 = vmatpush.msra.mxu0 %v900
  %954 = vmatpush.msra.mxu0 %v899
  %955 = vmatpush.msra.mxu0 %v898
  %956 = vmatpush.msra.mxu0 %v897
  %957 = vmatpush.msra.mxu0 %v896
  %958 = vmatpush.msra.mxu0 %v895
  %959 = vmatpush.msra.mxu0 %v894
  %960 = vmatpush.msra.mxu0 %v893
  %961 = vmatmul.f32.gmra.mxu0 %v944
  %v962 = vpop.f32.mrf.mxu0
  %v963 = vadd.f32 0.0, %v962
  %964 = vdwg.mxu0
  %v965 = vadd.f32 %v870, %v963
  %v966 = vxor.u32 %v965, 2147483648
  %v967 = vmul.f32 %v966, 1.442695
  %v968 = vpow.pop %v967
  %v969 = vadd.f32 %v968, 1.0
  %v970 = vrcp.pop %v969
  %v971 = vmul.f32 %v969, %v970
  %v972 = vsub.f32 1.0, %v971
  %v973 = vmul.f32 %v970, %v972
  %v974 = vadd.f32 %v970, %v973
  %vm975 = vweird.f32 %v969
  %vm976 = vweird.f32 %v970
  %vm977 = vmor %vm975, %vm976
  %v978 = vsel %vm977, %v970, %v974
  %v979 = vand.u32 2147483647, %v969
  %vm980 = vcmp.eq.f32.partialorder %v979, 8.507059e+37
  %v981 = vand.u32 %v969, 2147483648
  %v982 = vor.u32 1.1754944e-38, %v981
  %v983 = vsel %vm980, %v982, %v978
  %v984 = vmul.f32 1.0, %v983
  %v985 = vtanh.pop %v965
  %987 = vrot.lane.b32.xlu0 %v984, 96
  %v988 = vpop.permute.xlu0 %987
  %990 = vrot.lane.b32.xlu0 %v984, 64
  %v991 = vpop.permute.xlu0 %990
  %994 = vrot.lane.b32.xlu0 %v985, 32
  %v995 = vpop.permute.xlu0 %994
  %v997 = vmul.f32 %v988, %v942
  %v998 = vmul.f32 %v984, %v995
  %v999 = vadd.f32 %v997, %v998
  %v1000 = vtanh.pop %v999
  %v1001 = vmul.f32 %v991, %v1000
  %1002 = vmatpush.msra.mxu0 %v908
  %1003 = vmatpush.msra.mxu0 %v907
  %1004 = vmatpush.msra.mxu0 %v906
  %1005 = vmatpush.msra.mxu0 %v905
  %1006 = vmatpush.msra.mxu0 %v904
  %1007 = vmatpush.msra.mxu0 %v903
  %1008 = vmatpush.msra.mxu0 %v902
  %1009 = vmatpush.msra.mxu0 %v901
  %1010 = vmatpush.msra.mxu0 %v900
  %1011 = vmatpush.msra.mxu0 %v899
  %1012 = vmatpush.msra.mxu0 %v898
  %1013 = vmatpush.msra.mxu0 %v897
  %1014 = vmatpush.msra.mxu0 %v896
  %1015 = vmatpush.msra.mxu0 %v895
  %1016 = vmatpush.msra.mxu0 %v894
  %1017 = vmatpush.msra.mxu0 %v893
  %1018 = vmatmul.f32.gmra.mxu0 %v1001
  %v1019 = vpop.f32.mrf.mxu0
  %v1020 = vadd.f32 0.0, %v1019
  %1021 = vdwg.mxu0
  %v1022 = vadd.f32 %v873, %v1020
  %v1023 = vxor.u32 %v1022, 2147483648
  %v1024 = vmul.f32 %v1023, 1.442695
  %v1025 = vpow.pop %v1024
  %v1026 = vadd.f32 %v1025, 1.0
  %v1027 = vrcp.pop %v1026
  %v1028 = vmul.f32 %v1026, %v1027
  %v1029 = vsub.f32 1.0, %v1028
  %v1030 = vmul.f32 %v1027, %v1029
  %v1031 = vadd.f32 %v1027, %v1030
  %vm1032 = vweird.f32 %v1026
  %vm1033 = vweird.f32 %v1027
  %vm1034 = vmor %vm1032, %vm1033
  %v1035 = vsel %vm1034, %v1027, %v1031
  %v1036 = vand.u32 2147483647, %v1026
  %vm1037 = vcmp.eq.f32.partialorder %v1036, 8.507059e+37
  %v1038 = vand.u32 %v1026, 2147483648
  %v1039 = vor.u32 1.1754944e-38, %v1038
  %v1040 = vsel %vm1037, %v1039, %v1035
  %v1041 = vmul.f32 1.0, %v1040
  %v1042 = vtanh.pop %v1022
  %1044 = vrot.lane.b32.xlu0 %v1041, 96
  %v1045 = vpop.permute.xlu0 %1044
  %1047 = vrot.lane.b32.xlu0 %v1041, 64
  %v1048 = vpop.permute.xlu0 %1047
  %1051 = vrot.lane.b32.xlu0 %v1042, 32
  %v1052 = vpop.permute.xlu0 %1051
  %v1054 = vmul.f32 %v1045, %v999
  %v1055 = vmul.f32 %v1041, %v1052
  %v1056 = vadd.f32 %v1054, %v1055
  %v1057 = vtanh.pop %v1056
  %v1058 = vmul.f32 %v1048, %v1057
  %1059 = vmatpush.msra.mxu0 %v908
  %1060 = vmatpush.msra.mxu0 %v907
  %1061 = vmatpush.msra.mxu0 %v906
  %1062 = vmatpush.msra.mxu0 %v905
  %1063 = vmatpush.msra.mxu0 %v904
  %1064 = vmatpush.msra.mxu0 %v903
  %1065 = vmatpush.msra.mxu0 %v902
  %1066 = vmatpush.msra.mxu0 %v901
  %1067 = vmatpush.msra.mxu0 %v900
  %1068 = vmatpush.msra.mxu0 %v899
  %1069 = vmatpush.msra.mxu0 %v898
  %1070 = vmatpush.msra.mxu0 %v897
  %1071 = vmatpush.msra.mxu0 %v896
  %1072 = vmatpush.msra.mxu0 %v895
  %1073 = vmatpush.msra.mxu0 %v894
  %1074 = vmatpush.msra.mxu0 %v893
  %1075 = vmatmul.f32.gmra.mxu0 %v1058
  %v1076 = vpop.f32.mrf.mxu0
  %v1077 = vadd.f32 0.0, %v1076
  %1078 = vdwg.mxu0
  %v1079 = vadd.f32 %v876, %v1077
  %v1080 = vxor.u32 %v1079, 2147483648
  %v1081 = vmul.f32 %v1080, 1.442695
  %v1082 = vpow.pop %v1081
  %v1083 = vadd.f32 %v1082, 1.0
  %v1084 = vrcp.pop %v1083
  %v1085 = vmul.f32 %v1083, %v1084
  %v1086 = vsub.f32 1.0, %v1085
  %v1087 = vmul.f32 %v1084, %v1086
  %v1088 = vadd.f32 %v1084, %v1087
  %vm1089 = vweird.f32 %v1083
  %vm1090 = vweird.f32 %v1084
  %vm1091 = vmor %vm1089, %vm1090
  %v1092 = vsel %vm1091, %v1084, %v1088
  %v1093 = vand.u32 2147483647, %v1083
  %vm1094 = vcmp.eq.f32.partialorder %v1093, 8.507059e+37
  %v1095 = vand.u32 %v1083, 2147483648
  %v1096 = vor.u32 1.1754944e-38, %v1095
  %v1097 = vsel %vm1094, %v1096, %v1092
  %v1098 = vmul.f32 1.0, %v1097
  %v1099 = vtanh.pop %v1079
  %1101 = vrot.lane.b32.xlu0 %v1098, 96
  %v1102 = vpop.permute.xlu0 %1101
  %1104 = vrot.lane.b32.xlu0 %v1098, 64
  %v1105 = vpop.permute.xlu0 %1104
  %1108 = vrot.lane.b32.xlu0 %v1099, 32
  %v1109 = vpop.permute.xlu0 %1108
  %v1111 = vmul.f32 %v1102, %v1056
  %v1112 = vmul.f32 %v1098, %v1109
  %v1113 = vadd.f32 %v1111, %v1112
  %v1114 = vtanh.pop %v1113
  %v1115 = vmul.f32 %v1105, %v1114
  %1116 = vmatpush.msra.mxu0 %v908
  %1117 = vmatpush.msra.mxu0 %v907
  %1118 = vmatpush.msra.mxu0 %v906
  %1119 = vmatpush.msra.mxu0 %v905
  %1120 = vmatpush.msra.mxu0 %v904
  %1121 = vmatpush.msra.mxu0 %v903
  %1122 = vmatpush.msra.mxu0 %v902
  %1123 = vmatpush.msra.mxu0 %v901
  %1124 = vmatpush.msra.mxu0 %v900
  %1125 = vmatpush.msra.mxu0 %v899
  %1126 = vmatpush.msra.mxu0 %v898
  %1127 = vmatpush.msra.mxu0 %v897
  %1128 = vmatpush.msra.mxu0 %v896
  %1129 = vmatpush.msra.mxu0 %v895
  %1130 = vmatpush.msra.mxu0 %v894
  %1131 = vmatpush.msra.mxu0 %v893
  %1132 = vmatmul.f32.gmra.mxu0 %v1115
  %v1133 = vpop.f32.mrf.mxu0
  %v1134 = vadd.f32 0.0, %v1133
  %1135 = vdwg.mxu0
  %v1136 = vadd.f32 %v879, %v1134
  %v1137 = vxor.u32 %v1136, 2147483648
  %v1138 = vmul.f32 %v1137, 1.442695
  %v1139 = vpow.pop %v1138
  %v1140 = vadd.f32 %v1139, 1.0
  %v1141 = vrcp.pop %v1140
  %v1142 = vmul.f32 %v1140, %v1141
  %v1143 = vsub.f32 1.0, %v1142
  %v1144 = vmul.f32 %v1141, %v1143
  %v1145 = vadd.f32 %v1141, %v1144
  %vm1146 = vweird.f32 %v1140
  %vm1147 = vweird.f32 %v1141
  %vm1148 = vmor %vm1146, %vm1147
  %v1149 = vsel %vm1148, %v1141, %v1145
  %v1150 = vand.u32 2147483647, %v1140
  %vm1151 = vcmp.eq.f32.partialorder %v1150, 8.507059e+37
  %v1152 = vand.u32 %v1140, 2147483648
  %v1153 = vor.u32 1.1754944e-38, %v1152
  %v1154 = vsel %vm1151, %v1153, %v1149
  %v1155 = vmul.f32 1.0, %v1154
  %v1156 = vtanh.pop %v1136
  %1158 = vrot.lane.b32.xlu0 %v1155, 96
  %v1159 = vpop.permute.xlu0 %1158
  %1161 = vrot.lane.b32.xlu0 %v1155, 64
  %v1162 = vpop.permute.xlu0 %1161
  %1165 = vrot.lane.b32.xlu0 %v1156, 32
  %v1166 = vpop.permute.xlu0 %1165
  %v1168 = vmul.f32 %v1159, %v1113
  %v1169 = vmul.f32 %v1155, %v1166
  %v1170 = vadd.f32 %v1168, %v1169
  %v1171 = vtanh.pop %v1170
  %v1172 = vmul.f32 %v1162, %v1171
  %1173 = vmatpush.msra.mxu0 %v908
  %1174 = vmatpush.msra.mxu0 %v907
  %1175 = vmatpush.msra.mxu0 %v906
  %1176 = vmatpush.msra.mxu0 %v905
  %1177 = vmatpush.msra.mxu0 %v904
  %1178 = vmatpush.msra.mxu0 %v903
  %1179 = vmatpush.msra.mxu0 %v902
  %1180 = vmatpush.msra.mxu0 %v901
  %1181 = vmatpush.msra.mxu0 %v900
  %1182 = vmatpush.msra.mxu0 %v899
  %1183 = vmatpush.msra.mxu0 %v898
  %1184 = vmatpush.msra.mxu0 %v897
  %1185 = vmatpush.msra.mxu0 %v896
  %1186 = vmatpush.msra.mxu0 %v895
  %1187 = vmatpush.msra.mxu0 %v894
  %1188 = vmatpush.msra.mxu0 %v893
  %1189 = vmatmul.f32.gmra.mxu0 %v1172
  %v1190 = vpop.f32.mrf.mxu0
  %v1191 = vadd.f32 0.0, %v1190
  %1192 = vdwg.mxu0
  %v1193 = vadd.f32 %v882, %v1191
  %v1194 = vxor.u32 %v1193, 2147483648
  %v1195 = vmul.f32 %v1194, 1.442695
  %v1196 = vpow.pop %v1195
  %v1197 = vadd.f32 %v1196, 1.0
  %v1198 = vrcp.pop %v1197
  %v1199 = vmul.f32 %v1197, %v1198
  %v1200 = vsub.f32 1.0, %v1199
  %v1201 = vmul.f32 %v1198, %v1200
  %v1202 = vadd.f32 %v1198, %v1201
  %vm1203 = vweird.f32 %v1197
  %vm1204 = vweird.f32 %v1198
  %vm1205 = vmor %vm1203, %vm1204
  %v1206 = vsel %vm1205, %v1198, %v1202
  %v1207 = vand.u32 2147483647, %v1197
  %vm1208 = vcmp.eq.f32.partialorder %v1207, 8.507059e+37
  %v1209 = vand.u32 %v1197, 2147483648
  %v1210 = vor.u32 1.1754944e-38, %v1209
  %v1211 = vsel %vm1208, %v1210, %v1206
  %v1212 = vmul.f32 1.0, %v1211
  %v1213 = vtanh.pop %v1193
  %1215 = vrot.lane.b32.xlu0 %v1212, 96
  %v1216 = vpop.permute.xlu0 %1215
  %1218 = vrot.lane.b32.xlu0 %v1212, 64
  %v1219 = vpop.permute.xlu0 %1218
  %1222 = vrot.lane.b32.xlu0 %v1213, 32
  %v1223 = vpop.permute.xlu0 %1222
  %v1225 = vmul.f32 %v1216, %v1170
  %v1226 = vmul.f32 %v1212, %v1223
  %v1227 = vadd.f32 %v1225, %v1226
  %v1228 = vtanh.pop %v1227
  %v1229 = vmul.f32 %v1219, %v1228
  %1230 = vmatpush.msra.mxu0 %v908
  %1231 = vmatpush.msra.mxu0 %v907
  %1232 = vmatpush.msra.mxu0 %v906
  %1233 = vmatpush.msra.mxu0 %v905
  %1234 = vmatpush.msra.mxu0 %v904
  %1235 = vmatpush.msra.mxu0 %v903
  %1236 = vmatpush.msra.mxu0 %v902
  %1237 = vmatpush.msra.mxu0 %v901
  %1238 = vmatpush.msra.mxu0 %v900
  %1239 = vmatpush.msra.mxu0 %v899
  %1240 = vmatpush.msra.mxu0 %v898
  %1241 = vmatpush.msra.mxu0 %v897
  %1242 = vmatpush.msra.mxu0 %v896
  %1243 = vmatpush.msra.mxu0 %v895
  %1244 = vmatpush.msra.mxu0 %v894
  %1245 = vmatpush.msra.mxu0 %v893
  %1246 = vmatmul.f32.gmra.mxu0 %v1229
  %v1247 = vpop.f32.mrf.mxu0
  %v1248 = vadd.f32 0.0, %v1247
  %1249 = vdwg.mxu0
  %v1250 = vadd.f32 %v885, %v1248
  %v1251 = vxor.u32 %v1250, 2147483648
  %v1252 = vmul.f32 %v1251, 1.442695
  %v1253 = vpow.pop %v1252
  %v1254 = vadd.f32 %v1253, 1.0
  %v1255 = vrcp.pop %v1254
  %v1256 = vmul.f32 %v1254, %v1255
  %v1257 = vsub.f32 1.0, %v1256
  %v1258 = vmul.f32 %v1255, %v1257
  %v1259 = vadd.f32 %v1255, %v1258
  %vm1260 = vweird.f32 %v1254
  %vm1261 = vweird.f32 %v1255
  %vm1262 = vmor %vm1260, %vm1261
  %v1263 = vsel %vm1262, %v1255, %v1259
  %v1264 = vand.u32 2147483647, %v1254
  %vm1265 = vcmp.eq.f32.partialorder %v1264, 8.507059e+37
  %v1266 = vand.u32 %v1254, 2147483648
  %v1267 = vor.u32 1.1754944e-38, %v1266
  %v1268 = vsel %vm1265, %v1267, %v1263
  %v1269 = vmul.f32 1.0, %v1268
  %v1270 = vtanh.pop %v1250
  %1272 = vrot.lane.b32.xlu0 %v1269, 96
  %v1273 = vpop.permute.xlu0 %1272
  %1275 = vrot.lane.b32.xlu0 %v1269, 64
  %v1276 = vpop.permute.xlu0 %1275
  %1279 = vrot.lane.b32.xlu0 %v1270, 32
  %v1280 = vpop.permute.xlu0 %1279
  %v1282 = vmul.f32 %v1273, %v1227
  %v1283 = vmul.f32 %v1269, %v1280
  %v1284 = vadd.f32 %v1282, %v1283
  %v1285 = vtanh.pop %v1284
  %v1286 = vmul.f32 %v1276, %v1285
  %1287 = vmatpush.msra.mxu0 %v908
  %1288 = vmatpush.msra.mxu0 %v907
  %1289 = vmatpush.msra.mxu0 %v906
  %1290 = vmatpush.msra.mxu0 %v905
  %1291 = vmatpush.msra.mxu0 %v904
  %1292 = vmatpush.msra.mxu0 %v903
  %1293 = vmatpush.msra.mxu0 %v902
  %1294 = vmatpush.msra.mxu0 %v901
  %1295 = vmatpush.msra.mxu0 %v900
  %1296 = vmatpush.msra.mxu0 %v899
  %1297 = vmatpush.msra.mxu0 %v898
  %1298 = vmatpush.msra.mxu0 %v897
  %1299 = vmatpush.msra.mxu0 %v896
  %1300 = vmatpush.msra.mxu0 %v895
  %1301 = vmatpush.msra.mxu0 %v894
  %1302 = vmatpush.msra.mxu0 %v893
  %1303 = vmatmul.f32.gmra.mxu0 %v1286
  %v1304 = vpop.f32.mrf.mxu0
  %v1305 = vadd.f32 0.0, %v1304
  %1306 = vdwg.mxu0
  %v1307 = vadd.f32 %v888, %v1305
  %v1308 = vxor.u32 %v1307, 2147483648
  %v1309 = vmul.f32 %v1308, 1.442695
  %v1310 = vpow.pop %v1309
  %v1311 = vadd.f32 %v1310, 1.0
  %v1312 = vrcp.pop %v1311
  %v1313 = vmul.f32 %v1311, %v1312
  %v1314 = vsub.f32 1.0, %v1313
  %v1315 = vmul.f32 %v1312, %v1314
  %v1316 = vadd.f32 %v1312, %v1315
  %vm1317 = vweird.f32 %v1311
  %vm1318 = vweird.f32 %v1312
  %vm1319 = vmor %vm1317, %vm1318
  %v1320 = vsel %vm1319, %v1312, %v1316
  %v1321 = vand.u32 2147483647, %v1311
  %vm1322 = vcmp.eq.f32.partialorder %v1321, 8.507059e+37
  %v1323 = vand.u32 %v1311, 2147483648
  %v1324 = vor.u32 1.1754944e-38, %v1323
  %v1325 = vsel %vm1322, %v1324, %v1320
  %v1326 = vmul.f32 1.0, %v1325
  %v1327 = vtanh.pop %v1307
  %1329 = vrot.lane.b32.xlu0 %v1326, 96
  %v1330 = vpop.permute.xlu0 %1329
  %1332 = vrot.lane.b32.xlu0 %v1326, 64
  %v1333 = vpop.permute.xlu0 %1332
  %1336 = vrot.lane.b32.xlu0 %v1327, 32
  %v1337 = vpop.permute.xlu0 %1336
  %v1339 = vmul.f32 %v1330, %v1284
  %v1340 = vmul.f32 %v1326, %v1337
  %v1341 = vadd.f32 %v1339, %v1340
  %v1342 = vtanh.pop %v1341
  %v1343 = vmul.f32 %v1333, %v1342
  %1344 = vmatpush.msra.mxu0 %v908
  %1345 = vmatpush.msra.mxu0 %v907
  %1346 = vmatpush.msra.mxu0 %v906
  %1347 = vmatpush.msra.mxu0 %v905
  %1348 = vmatpush.msra.mxu0 %v904
  %1349 = vmatpush.msra.mxu0 %v903
  %1350 = vmatpush.msra.mxu0 %v902
  %1351 = vmatpush.msra.mxu0 %v901
  %1352 = vmatpush.msra.mxu0 %v900
  %1353 = vmatpush.msra.mxu0 %v899
  %1354 = vmatpush.msra.mxu0 %v898
  %1355 = vmatpush.msra.mxu0 %v897
  %1356 = vmatpush.msra.mxu0 %v896
  %1357 = vmatpush.msra.mxu0 %v895
  %1358 = vmatpush.msra.mxu0 %v894
  %1359 = vmatpush.msra.mxu0 %v893
  %1360 = vmatmul.f32.gmra.mxu0 %v1343
  %v1361 = vpop.f32.mrf.mxu0
  %v1362 = vadd.f32 0.0, %v1361
  %1363 = vdwg.mxu0
  %v1364 = vadd.f32 %v891, %v1362
  %v1365 = vxor.u32 %v1364, 2147483648
  %v1366 = vmul.f32 %v1365, 1.442695
  %v1367 = vpow.pop %v1366
  %v1368 = vadd.f32 %v1367, 1.0
  %v1369 = vrcp.pop %v1368
  %v1370 = vmul.f32 %v1368, %v1369
  %v1371 = vsub.f32 1.0, %v1370
  %v1372 = vmul.f32 %v1369, %v1371
  %v1373 = vadd.f32 %v1369, %v1372
  %vm1374 = vweird.f32 %v1368
  %vm1375 = vweird.f32 %v1369
  %vm1376 = vmor %vm1374, %vm1375
  %v1377 = vsel %vm1376, %v1369, %v1373
  %v1378 = vand.u32 2147483647, %v1368
  %vm1379 = vcmp.eq.f32.partialorder %v1378, 8.507059e+37
  %v1380 = vand.u32 %v1368, 2147483648
  %v1381 = vor.u32 1.1754944e-38, %v1380
  %v1382 = vsel %vm1379, %v1381, %v1377
  %v1383 = vmul.f32 1.0, %v1382
  %v1384 = vtanh.pop %v1364
  %1386 = vrot.lane.b32.xlu0 %v1383, 96
  %v1387 = vpop.permute.xlu0 %1386
  %1389 = vrot.lane.b32.xlu0 %v1383, 64
  %v1390 = vpop.permute.xlu0 %1389
  %1393 = vrot.lane.b32.xlu0 %v1384, 32
  %v1394 = vpop.permute.xlu0 %1393
  %v1396 = vmul.f32 %v1387, %v1341
  %v1397 = vmul.f32 %v1383, %v1394
  %v1398 = vadd.f32 %v1396, %v1397
  %v1399 = vtanh.pop %v1398
  %v1400 = vmul.f32 %v1390, %v1399
  %v1401 = vld [vmem:[%s2 + $0x1d0] sm:$0xff]
  %v1402 = vld [vmem:[%s2 + $0x1d8] sm:$0xff]
  %v1403 = vld [vmem:[%s2 + $0x1e0] sm:$0xff]
  %v1404 = vld [vmem:[%s2 + $0x1e8] sm:$0xff]
  %v1405 = vld [vmem:[%s2 + $0x1f0] sm:$0xff]
  %v1406 = vld [vmem:[%s2 + $0x1f8] sm:$0xff]
  %v1407 = vld [vmem:[%s2 + $0x200] sm:$0xff]
  %v1408 = vld [vmem:[%s2 + $0x208] sm:$0xff]
  %v1409 = vld [vmem:[%s2 + $0x210] sm:$0xff]
  %v1410 = vld [vmem:[%s2 + $0x218] sm:$0xff]
  %v1411 = vld [vmem:[%s2 + $0x220] sm:$0xff]
  %v1412 = vld [vmem:[%s2 + $0x228] sm:$0xff]
  %v1413 = vld [vmem:[%s2 + $0x230] sm:$0xff]
  %v1414 = vld [vmem:[%s2 + $0x238] sm:$0xff]
  %v1415 = vld [vmem:[%s2 + $0x240] sm:$0xff]
  %v1416 = vld [vmem:[%s2 + $0x248] sm:$0xff]
  %v1417 = vperm.slane %v14, 2
  %1418 = vmatpush.msra.mxu0 %v1416
  %1419 = vmatpush.msra.mxu0 %v1415
  %1420 = vmatpush.msra.mxu0 %v1414
  %1421 = vmatpush.msra.mxu0 %v1413
  %1422 = vmatpush.msra.mxu0 %v1412
  %1423 = vmatpush.msra.mxu0 %v1411
  %1424 = vmatpush.msra.mxu0 %v1410
  %1425 = vmatpush.msra.mxu0 %v1409
  %1426 = vmatpush.msra.mxu0 %v1408
  %1427 = vmatpush.msra.mxu0 %v1407
  %1428 = vmatpush.msra.mxu0 %v1406
  %1429 = vmatpush.msra.mxu0 %v1405
  %1430 = vmatpush.msra.mxu0 %v1404
  %1431 = vmatpush.msra.mxu0 %v1403
  %1432 = vmatpush.msra.mxu0 %v1402
  %1433 = vmatpush.msra.mxu0 %v1401
  %1434 = vmatmul.f32.gmra.mxu0 %v1400
  %v1435 = vpop.f32.mrf.mxu0
  %v1436 = vadd.f32 %v1417, %v1435
  %1437 = vdwg.mxu0
  %1438 = vst [vmem:[%s3] sm:$0xff] %v1436
  // Predicated region
  $region14: #{image_captioning_lstm_forward.1} parent=0 // pred_check
    _
  $region15: #{image_captioning_lstm_forward.1} parent=0 // pred_check_branch
    %1440 = sbr.rel (0) target = $region17
  $region16: #{image_captioning_lstm_forward.1} parent=0 // pred_region
    _
  $region17: #{image_captioning_lstm_forward.1} parent=0 // pred_fallthru
    _
  // Predicated region
  $region18: #{image_captioning_lstm_forward.1} parent=0 // pred_check
    _
  $region19: #{image_captioning_lstm_forward.1} parent=0 // pred_check_branch
    %1442 = sbr.rel (0) target = $region21
  $region20: #{image_captioning_lstm_forward.1} parent=0 // pred_region
    _
  $region21: #{image_captioning_lstm_forward.1} parent=0 // pred_fallthru
    _

</llo_original>
